<compile_context>
chip_gen: v6e
topology: v6e:2x2x1
jax: 0.10.0
libtpu: 0.0.40
codegen_flags: <defaults>
</compile_context>

<pallas_src>
import functools
import math

import jax
import jax.numpy as jnp
from jax.experimental import pallas as pl
from jax.experimental.pallas import tpu as pltpu


def _round_up(n: int, m: int) -> int:
    return ((n + m - 1) // m) * m


# ---------------------------------------------------------------------------
# Fused kernel: QKV projection + flash-style causal attention (online softmax).
# Score-matrix rows = key positions, cols = query positions (module does K @ Q^T);
# the softmax and the V contraction run over the col axis (innermost grid axis).
# ---------------------------------------------------------------------------
def _fused_attn_kernel(xr_ref, xc_ref, w_ref, b_ref, o_ref,
                       k_sc, m_sc, l_sc, acc_sc, *, h_pad, recip_approx):
    r = pl.program_id(1)          # row (key) tile
    c = pl.program_id(2)          # col (query/value) tile; reduction axis (innermost)
    e_dim = xr_ref.shape[-1]

    def _project(x3, col0):
        # (bb, tr, E) @ (E, h_pad) as a plain 2D MXU matmul with f32 accumulation.
        bb, t, _ = x3.shape
        y = jnp.dot(x3.reshape(bb * t, e_dim), w_ref[:, col0:col0 + h_pad],
                    preferred_element_type=jnp.float32)
        y = y + b_ref[:, col0:col0 + h_pad]            # (1, h_pad) broadcast, fused bias
        return y.reshape(bb, t, h_pad)

    @pl.when(c == 0)
    def _init():
        # K for this row tile (1/sqrt(H) already folded into Wk/bk) + softmax state.
        k_sc[...] = _project(xr_ref[...], 0).astype(k_sc.dtype)
        m_sc[...] = jnp.full(m_sc.shape, -jnp.inf, jnp.float32)
        l_sc[...] = jnp.zeros(l_sc.shape, jnp.float32)
        acc_sc[...] = jnp.zeros(acc_sc.shape, jnp.float32)

    def _qv_scores():
        xc = xc_ref[...]
        q = _project(xc, h_pad).astype(k_sc.dtype)
        v = _project(xc, 2 * h_pad).astype(k_sc.dtype)
        # s[b, i, j] = k[b, i, :] . q[b, j, :] -- contraction over the head dim,
        # no q^T materialized (no XLU transpose / extra VMEM round-trip).
        s = jax.lax.dot_general(
            k_sc[...], q,
            dimension_numbers=(((2,), (2,)), ((0,), (0,))),
            preferred_element_type=jnp.float32)
        return s, v

    def _update(s, v):
        # Online-softmax accumulation, all in f32.
        m_prev = m_sc[...]
        m_new = jnp.maximum(m_prev, jnp.max(s, axis=-1, keepdims=True))
        alpha = jnp.exp(m_prev - m_new)
        p = jnp.exp(s - m_new)
        l_sc[...] = alpha * l_sc[...] + jnp.sum(p, axis=-1, keepdims=True)
        pv = jax.lax.dot_general(
            p.astype(v.dtype), v,
            dimension_numbers=(((2,), (1,)), ((0,), (0,))),
            preferred_element_type=jnp.float32)        # (bb, tr, h_pad)
        acc_sc[...] = alpha * acc_sc[...] + pv
        m_sc[...] = m_new

    # Col tiles strictly above the causal diagonal (c > r) contribute nothing: skipped
    # (and, thanks to the clamped index_map, do not re-DMA either).
    @pl.when(c < r)
    def _below_diag():                                 # fully unmasked tiles: no mask work
        s, v = _qv_scores()
        _update(s, v)

    @pl.when(c == r)
    def _diag_and_finalize():                          # only the diagonal tile builds the mask
        s, v = _qv_scores()
        tr_, tc_ = s.shape[1], s.shape[2]
        ii = jax.lax.broadcasted_iota(jnp.int32, (tr_, tc_), 0)   # key index within tile
        jj = jax.lax.broadcasted_iota(jnp.int32, (tr_, tc_), 1)   # query index within tile
        _update(jnp.where(jj <= ii, s, -jnp.inf), v)   # 2D mask broadcasts over batch tile
        # The diagonal tile is the last contributing col tile for this row tile: finalize.
        l = l_sc[...]
        if recip_approx:
            out = acc_sc[...] * pl.reciprocal(l, approx=True)      # EUP slot (bf16 path)
        else:
            out = acc_sc[...] / l                                  # exact f32 validation path
        o_ref[...] = out.astype(o_ref.dtype)           # lane-dense (h_pad) store


# ---------------------------------------------------------------------------
# Wrapper
# ---------------------------------------------------------------------------
@functools.partial(jax.jit, static_argnames=("compute_dtype",))
def single_head_self_attention(x, wk, bk, wq, bq, wv, bv, *, compute_dtype=jnp.bfloat16):
    """x: (B, T, E). wk/wq/wv: (E, H) pre-transposed nn.Linear weights. b*: (H,).
    Returns (B, T, H) in x.dtype. compute_dtype = MXU operand dtype; softmax math is f32."""
    B, T, E = x.shape
    H = wk.shape[1]
    h_pad = _round_up(H, 128)                  # lane-dense head dim
    cd = jnp.dtype(compute_dtype)
    cd_bytes = cd.itemsize
    out_bytes = jnp.dtype(x.dtype).itemsize
    scale = 1.0 / math.sqrt(H)

    # Fused (Wk*scale | Wq | Wv) and (bk*scale | bq | bv), zero-padded columns keep the
    # math exact; folding the score scale into K removes a per-tile VALU multiply.
    def _pad_w(w):
        return jnp.pad(w, ((0, 0), (0, h_pad - H)))

    def _pad_b(b):
        return jnp.pad(b, (0, h_pad - H))

    w_fused = jnp.concatenate([_pad_w(wk * scale), _pad_w(wq), _pad_w(wv)], axis=1).astype(cd)
    b_fused = jnp.concatenate([_pad_b(bk * scale), _pad_b(bq), _pad_b(bv)])
    b_fused = b_fused.reshape(1, 3 * h_pad).astype(jnp.float32)

    # ---- tiling (generation-aware) ------------------------------------------------
    tr = 256 if T >= 256 else _round_up(T, 8)          # row == col tile size
    bb = 1 if B <= 2 else (2 if B % 2 == 0 else 1)     # small bb: balanced parallel batch axis

    def vmem_need(bb_, tr_):
        x_tiles = 2 * 2 * bb_ * tr_ * E * cd_bytes                     # x_row + x_col, double-buffered
        w_tiles = 2 * (E * 3 * h_pad * cd_bytes + 3 * h_pad * 4)       # fused weights + bias
        o_tiles = 2 * bb_ * tr_ * h_pad * out_bytes
        scratch = bb_ * tr_ * (h_pad * (cd_bytes + 4) + 8)             # k_sc + acc + m/l
        temps = bb_ * tr_ * (2 * tr_ * 4 + 2 * h_pad * (4 + cd_bytes))  # s/p + q/v temporaries
        return x_tiles + w_tiles + o_tiles + scratch + temps

    try:
        vmem_cap = int(pltpu.get_tpu_info().vmem_capacity_bytes)
    except Exception:
        vmem_cap = 64 * 1024 * 1024            # assume the most restrictive (v7x per-TC)
    budget = min(48 * 1024 * 1024, (3 * vmem_cap) // 4)   # headroom for Mosaic internal scratch
    while vmem_need(bb, tr) > budget and (bb > 1 or tr > 8):
        if bb > 1:
            bb -= 1
        else:
            tr = max(8, _round_up(tr // 2, 8))

    need = vmem_need(bb, tr)
    vmem_limit = None if need <= 12 * 1024 * 1024 else min(48 * 1024 * 1024,
                                                           need + 8 * 1024 * 1024)

    # Pad T up to a tile multiple (padded query/value cols are always causally masked out
    # for real rows; padded output rows are sliced off below).
    T_pad = _round_up(T, tr)
    x_c = x.astype(cd)
    if T_pad != T:
        x_c = jnp.pad(x_c, ((0, 0), (0, T_pad - T), (0, 0)))

    n_r = T_pad // tr
    out_pad = pl.pallas_call(
        functools.partial(_fused_attn_kernel, h_pad=h_pad,
                          recip_approx=(cd != jnp.dtype(jnp.float32))),
        out_shape=jax.ShapeDtypeStruct((B, T_pad, h_pad), x.dtype),
        grid_spec=pltpu.PrefetchScalarGridSpec(
            num_scalar_prefetch=0,
            grid=(B // bb, n_r, n_r),
            in_specs=[
                # x for the row (key) tile: block index constant across c -> single DMA per r.
                pl.BlockSpec((bb, tr, E), lambda b, r, c: (b, r, 0)),
                # x for the col (query/value) tile: clamped so skipped (c > r) steps reuse
                # the resident block -> no DMA for the upper triangle.
                pl.BlockSpec((bb, tr, E), lambda b, r, c: (b, jnp.minimum(c, r), 0)),
                pl.BlockSpec((E, 3 * h_pad), lambda b, r, c: (0, 0)),   # fused weights
                pl.BlockSpec((1, 3 * h_pad), lambda b, r, c: (0, 0)),   # fused bias
            ],
            out_specs=pl.BlockSpec((bb, tr, h_pad), lambda b, r, c: (b, r, 0)),
            scratch_shapes=[
                pltpu.VMEM((bb, tr, h_pad), cd),             # K tile (pre-scaled)
                pltpu.VMEM((bb, tr, 1), jnp.float32),        # running max
                pltpu.VMEM((bb, tr, 1), jnp.float32),        # running denominator
                pltpu.VMEM((bb, tr, h_pad), jnp.float32),    # output accumulator
            ],
        ),
        compiler_params=pltpu.CompilerParams(
            dimension_semantics=("parallel", "parallel", "arbitrary"),
            vmem_limit_bytes=vmem_limit),
    )(x_c, x_c, w_fused, b_fused)

    return out_pad[:, :T, :H]


# ---------------------------------------------------------------------------
# Pure-JAX reference (mirrors the torch module; optional bf16 MXU operands)
# ---------------------------------------------------------------------------
def _reference(x, wk, bk, wq, bq, wv, bv, compute_dtype=jnp.float32):
    cd = compute_dtype
    xc = x.astype(cd)

    def proj(w, b):
        y = jnp.dot(xc, w.astype(cd), preferred_element_type=jnp.float32) + b
        return y.astype(cd)

    k = proj(wk, bk)
    q = proj(wq, bq)
    v = proj(wv, bv)
    s = jax.lax.dot_general(k, q, dimension_numbers=(((2,), (2,)), ((0,), (0,))),
                            preferred_element_type=jnp.float32)
    s = s * (1.0 / math.sqrt(wk.shape[1]))
    T = s.shape[-1]
    mask = jnp.tril(jnp.ones((T, T), dtype=bool))
    s = jnp.where(mask, s, -jnp.inf)
    wei = jax.nn.softmax(s, axis=-1)
    out = jnp.einsum('bij,bjh->bih', wei.astype(cd), v,
                     preferred_element_type=jnp.float32)
    return out.astype(x.dtype)


if __name__ == "__main__":
    B, T, EMB, HEAD = 2, 8, 32, 16

    key = jax.random.PRNGKey(0)
    kx, kwk, kbk, kwq, kbq, kwv, kbv = jax.random.split(key, 7)

    x = jax.random.normal(kx, (B, T, EMB), dtype=jnp.float32)
    bound = 1.0 / math.sqrt(EMB)
    wk = jax.random.uniform(kwk, (EMB, HEAD), minval=-bound, maxval=bound, dtype=jnp.float32)
    bk = jax.random.uniform(kbk, (HEAD,), minval=-bound, maxval=bound, dtype=jnp.float32)
    wq = jax.random.uniform(kwq, (EMB, HEAD), minval=-bound, maxval=bound, dtype=jnp.float32)
    bq = jax.random.uniform(kbq, (HEAD,), minval=-bound, maxval=bound, dtype=jnp.float32)
    wv = jax.random.uniform(kwv, (EMB, HEAD), minval=-bound, maxval=bound, dtype=jnp.float32)
    bv = jax.random.uniform(kbv, (HEAD,), minval=-bound, maxval=bound, dtype=jnp.float32)

    # f32 operand path: validates module semantics (exact division in the finalize).
    out_f32 = jax.block_until_ready(
        single_head_self_attention(x, wk, bk, wq, bq, wv, bv, compute_dtype=jnp.float32))
    ref_f32 = _reference(x, wk, bk, wq, bq, wv, bv, compute_dtype=jnp.float32)
    assert out_f32.shape == (B, T, HEAD)
    assert jnp.allclose(out_f32, ref_f32, atol=5e-3, rtol=5e-3), "f32 kernel mismatch vs reference"

    # bf16 MXU-operand fast path: check against a bf16-operand reference.
    out_bf16 = jax.block_until_ready(
        single_head_self_attention(x, wk, bk, wq, bq, wv, bv, compute_dtype=jnp.bfloat16))
    ref_bf16 = _reference(x, wk, bk, wq, bq, wv, bv, compute_dtype=jnp.bfloat16)
    assert out_bf16.shape == (B, T, HEAD)
    assert jnp.allclose(out_bf16, ref_bf16, atol=2e-2, rtol=2e-2), "bf16 kernel mismatch vs reference"

    print("KERNEL_OK")
</pallas_src>

<mosaic_0001>
module attributes {stable_mosaic.version = 11 : i64} {
  func.func @_fused_attn_kernel(%arg0: i32, %arg1: i32, %arg2: i32, %arg3: memref<1x8x32xf32, #tpu.memory_space<vmem>>, %arg4: memref<1x8x32xf32, #tpu.memory_space<vmem>>, %arg5: memref<32x384xf32, #tpu.memory_space<vmem>>, %arg6: memref<1x384xf32, #tpu.memory_space<vmem>>, %arg7: memref<1x8x128xf32, #tpu.memory_space<vmem>>, %arg8: memref<1x8x128xf32, #tpu.memory_space<vmem>>, %arg9: memref<1x8x1xf32, #tpu.memory_space<vmem>>, %arg10: memref<1x8x1xf32, #tpu.memory_space<vmem>>, %arg11: memref<1x8x128xf32, #tpu.memory_space<vmem>>) attributes {dimension_semantics = [#tpu.dimension_semantics<parallel>, #tpu.dimension_semantics<parallel>, #tpu.dimension_semantics<arbitrary>], iteration_bounds = array<i64: 2, 1, 1>, scalar_prefetch = 0 : i64, scratch_operands = 4 : i64, tpu.core_type = #tpu.core_type<tc>, window_params = [{transform_indices = @transform_0, window_bounds = array<i64: 1, 8, 32>}, {transform_indices = @transform_1, window_bounds = array<i64: 1, 8, 32>}, {pipeline_mode = #tpu.pipeline_mode<synchronous>, transform_indices = @transform_2, window_bounds = array<i64: 32, 384>}, {pipeline_mode = #tpu.pipeline_mode<synchronous>, transform_indices = @transform_3, window_bounds = array<i64: 1, 384>}, {transform_indices = @transform_4, window_bounds = array<i64: 1, 8, 128>}]} {
    %c0_i32 = arith.constant 0 : i32
    %0 = arith.cmpi eq, %arg2, %c0_i32 : i32
    %1 = arith.extui %0 : i1 to i32
    %c0_i32_0 = arith.constant 0 : i32
    %2 = arith.cmpi ne, %1, %c0_i32_0 : i32
    scf.if %2 {
      %c0 = arith.constant 0 : index
      %c0_3 = arith.constant 0 : index
      %c0_4 = arith.constant 0 : index
      %9 = vector.load %arg3[%c0, %c0_3, %c0_4] : memref<1x8x32xf32, #tpu.memory_space<vmem>>, vector<1x8x32xf32>
      %10 = vector.shape_cast %9 : vector<1x8x32xf32> to vector<8x32xf32>
      %c0_5 = arith.constant 0 : index
      %c0_6 = arith.constant 0 : index
      %11 = vector.load %arg5[%c0_5, %c0_6] : memref<32x384xf32, #tpu.memory_space<vmem>>, vector<32x128xf32>
      %cst = arith.constant dense<0.000000e+00> : vector<8x128xf32>
      %12 = tpu.matmul %10, %11, %cst {dimension_numbers = #tpu.dot_dimension_numbers<[1], [0], [0], [1], [0, 0, 1, 1], [], []>} : vector<8x32xf32>, vector<32x128xf32>, vector<8x128xf32> -> vector<8x128xf32>
      %c0_7 = arith.constant 0 : index
      %c0_8 = arith.constant 0 : index
      %13 = vector.load %arg6[%c0_7, %c0_8] : memref<1x384xf32, #tpu.memory_space<vmem>>, vector<1x128xf32>
      %14 = vector.broadcast %13 : vector<1x128xf32> to vector<8x128xf32>
      %15 = arith.addf %12, %14 : vector<8x128xf32>
      %16 = vector.shape_cast %15 : vector<8x128xf32> to vector<1x8x128xf32>
      %c0_9 = arith.constant 0 : index
      %c0_10 = arith.constant 0 : index
      %c0_11 = arith.constant 0 : index
      %17 = vector.load %arg8[%c0_9, %c0_10, %c0_11] : memref<1x8x128xf32, #tpu.memory_space<vmem>>, vector<1x8x128xf32>
      tpu.vector_store %arg8[%c0_9, %c0_10, %c0_11], %16 {strides = array<i32>} : memref<1x8x128xf32, #tpu.memory_space<vmem>>, vector<1x8x128xf32>,
      %cst_12 = arith.constant 0xFF800000 : f32
      %18 = vector.broadcast %cst_12 : f32 to vector<1x8x1xf32>
      %c0_13 = arith.constant 0 : index
      %c0_14 = arith.constant 0 : index
      %c0_15 = arith.constant 0 : index
      %19 = vector.load %arg9[%c0_13, %c0_14, %c0_15] : memref<1x8x1xf32, #tpu.memory_space<vmem>>, vector<1x8x1xf32>
      tpu.vector_store %arg9[%c0_13, %c0_14, %c0_15], %18 {strides = array<i32>} : memref<1x8x1xf32, #tpu.memory_space<vmem>>, vector<1x8x1xf32>,
      %cst_16 = arith.constant 0.000000e+00 : f32
      %20 = vector.broadcast %cst_16 : f32 to vector<1x8x1xf32>
      %c0_17 = arith.constant 0 : index
      %c0_18 = arith.constant 0 : index
      %c0_19 = arith.constant 0 : index
      %21 = vector.load %arg10[%c0_17, %c0_18, %c0_19] : memref<1x8x1xf32, #tpu.memory_space<vmem>>, vector<1x8x1xf32>
      tpu.vector_store %arg10[%c0_17, %c0_18, %c0_19], %20 {strides = array<i32>} : memref<1x8x1xf32, #tpu.memory_space<vmem>>, vector<1x8x1xf32>,
      %cst_20 = arith.constant 0.000000e+00 : f32
      %22 = vector.broadcast %cst_20 : f32 to vector<1x8x128xf32>
      %c0_21 = arith.constant 0 : index
      %c0_22 = arith.constant 0 : index
      %c0_23 = arith.constant 0 : index
      %23 = vector.load %arg11[%c0_21, %c0_22, %c0_23] : memref<1x8x128xf32, #tpu.memory_space<vmem>>, vector<1x8x128xf32>
      tpu.vector_store %arg11[%c0_21, %c0_22, %c0_23], %22 {strides = array<i32>} : memref<1x8x128xf32, #tpu.memory_space<vmem>>, vector<1x8x128xf32>,
    } else {
    }
    %3 = arith.cmpi slt, %arg2, %arg1 : i32
    %4 = arith.extui %3 : i1 to i32
    %c0_i32_1 = arith.constant 0 : i32
    %5 = arith.cmpi ne, %4, %c0_i32_1 : i32
    scf.if %5 {
      %c0 = arith.constant 0 : index
      %c0_3 = arith.constant 0 : index
      %c0_4 = arith.constant 0 : index
      %9 = vector.load %arg4[%c0, %c0_3, %c0_4] : memref<1x8x32xf32, #tpu.memory_space<vmem>>, vector<1x8x32xf32>
      %10 = vector.shape_cast %9 : vector<1x8x32xf32> to vector<8x32xf32>
      %c0_5 = arith.constant 0 : index
      %c128 = arith.constant 128 : index
      %11 = vector.load %arg5[%c0_5, %c128] : memref<32x384xf32, #tpu.memory_space<vmem>>, vector<32x128xf32>
      %cst = arith.constant dense<0.000000e+00> : vector<8x128xf32>
      %12 = tpu.matmul %10, %11, %cst {dimension_numbers = #tpu.dot_dimension_numbers<[1], [0], [0], [1], [0, 0, 1, 1], [], []>} : vector<8x32xf32>, vector<32x128xf32>, vector<8x128xf32> -> vector<8x128xf32>
      %c0_6 = arith.constant 0 : index
      %c128_7 = arith.constant 128 : index
      %13 = vector.load %arg6[%c0_6, %c128_7] : memref<1x384xf32, #tpu.memory_space<vmem>>, vector<1x128xf32>
      %14 = vector.broadcast %13 : vector<1x128xf32> to vector<8x128xf32>
      %15 = arith.addf %12, %14 : vector<8x128xf32>
      %16 = vector.shape_cast %15 : vector<8x128xf32> to vector<1x8x128xf32>
      %17 = vector.shape_cast %9 : vector<1x8x32xf32> to vector<8x32xf32>
      %c0_8 = arith.constant 0 : index
      %c256 = arith.constant 256 : index
      %18 = vector.load %arg5[%c0_8, %c256] : memref<32x384xf32, #tpu.memory_space<vmem>>, vector<32x128xf32>
      %cst_9 = arith.constant dense<0.000000e+00> : vector<8x128xf32>
      %19 = tpu.matmul %17, %18, %cst_9 {dimension_numbers = #tpu.dot_dimension_numbers<[1], [0], [0], [1], [0, 0, 1, 1], [], []>} : vector<8x32xf32>, vector<32x128xf32>, vector<8x128xf32> -> vector<8x128xf32>
      %c0_10 = arith.constant 0 : index
      %c256_11 = arith.constant 256 : index
      %20 = vector.load %arg6[%c0_10, %c256_11] : memref<1x384xf32, #tpu.memory_space<vmem>>, vector<1x128xf32>
      %21 = vector.broadcast %20 : vector<1x128xf32> to vector<8x128xf32>
      %22 = arith.addf %19, %21 : vector<8x128xf32>
      %23 = vector.shape_cast %22 : vector<8x128xf32> to vector<1x8x128xf32>
      %c0_12 = arith.constant 0 : index
      %c0_13 = arith.constant 0 : index
      %c0_14 = arith.constant 0 : index
      %24 = vector.load %arg8[%c0_12, %c0_13, %c0_14] : memref<1x8x128xf32, #tpu.memory_space<vmem>>, vector<1x8x128xf32>
      %cst_15 = arith.constant dense<0.000000e+00> : vector<1x8x8xf32>
      %25 = tpu.matmul %24, %16, %cst_15 {dimension_numbers = #tpu.dot_dimension_numbers<[2], [2], [1], [1], [0, 0, 0, 1, 1, 1], [0], [0]>} : vector<1x8x128xf32>, vector<1x8x128xf32>, vector<1x8x8xf32> -> vector<1x8x8xf32>
      %c0_16 = arith.constant 0 : index
      %c0_17 = arith.constant 0 : index
      %c0_18 = arith.constant 0 : index
      %26 = vector.load %arg9[%c0_16, %c0_17, %c0_18] : memref<1x8x1xf32, #tpu.memory_space<vmem>>, vector<1x8x1xf32>
      %cst_19 = arith.constant dense<0xFF800000> : vector<1x8xf32>
      %27 = vector.multi_reduction <maximumf>, %25, %cst_19 [2] : vector<1x8x8xf32> to vector<1x8xf32>
      %28 = vector.shape_cast %27 : vector<1x8xf32> to vector<1x8x1xf32>
      %29 = arith.maximumf %26, %28 : vector<1x8x1xf32>
      %30 = arith.subf %26, %29 : vector<1x8x1xf32>
      %31 = math.exp %30 : vector<1x8x1xf32>
      %32 = vector.broadcast %29 : vector<1x8x1xf32> to vector<1x8x8xf32>
      %33 = arith.subf %25, %32 : vector<1x8x8xf32>
      %34 = math.exp %33 : vector<1x8x8xf32>
      %c0_20 = arith.constant 0 : index
      %c0_21 = arith.constant 0 : index
      %c0_22 = arith.constant 0 : index
      %35 = vector.load %arg10[%c0_20, %c0_21, %c0_22] : memref<1x8x1xf32, #tpu.memory_space<vmem>>, vector<1x8x1xf32>
      %36 = arith.mulf %31, %35 : vector<1x8x1xf32>
      %cst_23 = arith.constant dense<0.000000e+00> : vector<1x8xf32>
      %37 = vector.multi_reduction <add>, %34, %cst_23 [2] : vector<1x8x8xf32> to vector<1x8xf32>
      %38 = vector.shape_cast %37 : vector<1x8xf32> to vector<1x8x1xf32>
      %39 = arith.addf %36, %38 : vector<1x8x1xf32>
      %c0_24 = arith.constant 0 : index
      %c0_25 = arith.constant 0 : index
      %c0_26 = arith.constant 0 : index
      %40 = vector.load %arg10[%c0_24, %c0_25, %c0_26] : memref<1x8x1xf32, #tpu.memory_space<vmem>>, vector<1x8x1xf32>
      tpu.vector_store %arg10[%c0_24, %c0_25, %c0_26], %39 {strides = array<i32>} : memref<1x8x1xf32, #tpu.memory_space<vmem>>, vector<1x8x1xf32>,
      %cst_27 = arith.constant dense<0.000000e+00> : vector<1x8x128xf32>
      %41 = tpu.matmul %34, %23, %cst_27 {dimension_numbers = #tpu.dot_dimension_numbers<[2], [1], [1], [2], [0, 0, 0, 1, 1, 2], [0], [0]>} : vector<1x8x8xf32>, vector<1x8x128xf32>, vector<1x8x128xf32> -> vector<1x8x128xf32>
      %c0_28 = arith.constant 0 : index
      %c0_29 = arith.constant 0 : index
      %c0_30 = arith.constant 0 : index
      %42 = vector.load %arg11[%c0_28, %c0_29, %c0_30] : memref<1x8x128xf32, #tpu.memory_space<vmem>>, vector<1x8x128xf32>
      %43 = vector.broadcast %31 : vector<1x8x1xf32> to vector<1x8x128xf32>
      %44 = arith.mulf %43, %42 : vector<1x8x128xf32>
      %45 = arith.addf %44, %41 : vector<1x8x128xf32>
      %c0_31 = arith.constant 0 : index
      %c0_32 = arith.constant 0 : index
      %c0_33 = arith.constant 0 : index
      %46 = vector.load %arg11[%c0_31, %c0_32, %c0_33] : memref<1x8x128xf32, #tpu.memory_space<vmem>>, vector<1x8x128xf32>
      tpu.vector_store %arg11[%c0_31, %c0_32, %c0_33], %45 {strides = array<i32>} : memref<1x8x128xf32, #tpu.memory_space<vmem>>, vector<1x8x128xf32>,
      %c0_34 = arith.constant 0 : index
      %c0_35 = arith.constant 0 : index
      %c0_36 = arith.constant 0 : index
      %47 = vector.load %arg9[%c0_34, %c0_35, %c0_36] : memref<1x8x1xf32, #tpu.memory_space<vmem>>, vector<1x8x1xf32>
      tpu.vector_store %arg9[%c0_34, %c0_35, %c0_36], %29 {strides = array<i32>} : memref<1x8x1xf32, #tpu.memory_space<vmem>>, vector<1x8x1xf32>,
    } else {
    }
    %6 = arith.cmpi eq, %arg2, %arg1 : i32
    %7 = arith.extui %6 : i1 to i32
    %c0_i32_2 = arith.constant 0 : i32
    %8 = arith.cmpi ne, %7, %c0_i32_2 : i32
    scf.if %8 {
      %c0 = arith.constant 0 : index
      %c0_3 = arith.constant 0 : index
      %c0_4 = arith.constant 0 : index
      %9 = vector.load %arg4[%c0, %c0_3, %c0_4] : memref<1x8x32xf32, #tpu.memory_space<vmem>>, vector<1x8x32xf32>
      %10 = vector.shape_cast %9 : vector<1x8x32xf32> to vector<8x32xf32>
      %c0_5 = arith.constant 0 : index
      %c128 = arith.constant 128 : index
      %11 = vector.load %arg5[%c0_5, %c128] : memref<32x384xf32, #tpu.memory_space<vmem>>, vector<32x128xf32>
      %cst = arith.constant dense<0.000000e+00> : vector<8x128xf32>
      %12 = tpu.matmul %10, %11, %cst {dimension_numbers = #tpu.dot_dimension_numbers<[1], [0], [0], [1], [0, 0, 1, 1], [], []>} : vector<8x32xf32>, vector<32x128xf32>, vector<8x128xf32> -> vector<8x128xf32>
      %c0_6 = arith.constant 0 : index
      %c128_7 = arith.constant 128 : index
      %13 = vector.load %arg6[%c0_6, %c128_7] : memref<1x384xf32, #tpu.memory_space<vmem>>, vector<1x128xf32>
      %14 = vector.broadcast %13 : vector<1x128xf32> to vector<8x128xf32>
      %15 = arith.addf %12, %14 : vector<8x128xf32>
      %16 = vector.shape_cast %15 : vector<8x128xf32> to vector<1x8x128xf32>
      %17 = vector.shape_cast %9 : vector<1x8x32xf32> to vector<8x32xf32>
      %c0_8 = arith.constant 0 : index
      %c256 = arith.constant 256 : index
      %18 = vector.load %arg5[%c0_8, %c256] : memref<32x384xf32, #tpu.memory_space<vmem>>, vector<32x128xf32>
      %cst_9 = arith.constant dense<0.000000e+00> : vector<8x128xf32>
      %19 = tpu.matmul %17, %18, %cst_9 {dimension_numbers = #tpu.dot_dimension_numbers<[1], [0], [0], [1], [0, 0, 1, 1], [], []>} : vector<8x32xf32>, vector<32x128xf32>, vector<8x128xf32> -> vector<8x128xf32>
      %c0_10 = arith.constant 0 : index
      %c256_11 = arith.constant 256 : index
      %20 = vector.load %arg6[%c0_10, %c256_11] : memref<1x384xf32, #tpu.memory_space<vmem>>, vector<1x128xf32>
      %21 = vector.broadcast %20 : vector<1x128xf32> to vector<8x128xf32>
      %22 = arith.addf %19, %21 : vector<8x128xf32>
      %23 = vector.shape_cast %22 : vector<8x128xf32> to vector<1x8x128xf32>
      %c0_12 = arith.constant 0 : index
      %c0_13 = arith.constant 0 : index
      %c0_14 = arith.constant 0 : index
      %24 = vector.load %arg8[%c0_12, %c0_13, %c0_14] : memref<1x8x128xf32, #tpu.memory_space<vmem>>, vector<1x8x128xf32>
      %cst_15 = arith.constant dense<0.000000e+00> : vector<1x8x8xf32>
      %25 = tpu.matmul %24, %16, %cst_15 {dimension_numbers = #tpu.dot_dimension_numbers<[2], [2], [1], [1], [0, 0, 0, 1, 1, 1], [0], [0]>} : vector<1x8x128xf32>, vector<1x8x128xf32>, vector<1x8x8xf32> -> vector<1x8x8xf32>
      %26 = tpu.iota {dimensions = array<i32: 0>} : vector<8x8xi32>
      %27 = tpu.iota {dimensions = array<i32: 1>} : vector<8x8xi32>
      %28 = arith.cmpi sle, %27, %26 : vector<8x8xi32>
      %cst_16 = arith.constant 0xFF800000 : f32
      %29 = vector.shape_cast %28 : vector<8x8xi1> to vector<1x8x8xi1>
      %30 = vector.broadcast %cst_16 : f32 to vector<1x8x8xf32>
      %31 = arith.select %29, %25, %30 : vector<1x8x8xi1>, vector<1x8x8xf32>
      %c0_17 = arith.constant 0 : index
      %c0_18 = arith.constant 0 : index
      %c0_19 = arith.constant 0 : index
      %32 = vector.load %arg9[%c0_17, %c0_18, %c0_19] : memref<1x8x1xf32, #tpu.memory_space<vmem>>, vector<1x8x1xf32>
      %cst_20 = arith.constant dense<0xFF800000> : vector<1x8xf32>
      %33 = vector.multi_reduction <maximumf>, %31, %cst_20 [2] : vector<1x8x8xf32> to vector<1x8xf32>
      %34 = vector.shape_cast %33 : vector<1x8xf32> to vector<1x8x1xf32>
      %35 = arith.maximumf %32, %34 : vector<1x8x1xf32>
      %36 = arith.subf %32, %35 : vector<1x8x1xf32>
      %37 = math.exp %36 : vector<1x8x1xf32>
      %38 = vector.broadcast %35 : vector<1x8x1xf32> to vector<1x8x8xf32>
      %39 = arith.subf %31, %38 : vector<1x8x8xf32>
      %40 = math.exp %39 : vector<1x8x8xf32>
      %c0_21 = arith.constant 0 : index
      %c0_22 = arith.constant 0 : index
      %c0_23 = arith.constant 0 : index
      %41 = vector.load %arg10[%c0_21, %c0_22, %c0_23] : memref<1x8x1xf32, #tpu.memory_space<vmem>>, vector<1x8x1xf32>
      %42 = arith.mulf %37, %41 : vector<1x8x1xf32>
      %cst_24 = arith.constant dense<0.000000e+00> : vector<1x8xf32>
      %43 = vector.multi_reduction <add>, %40, %cst_24 [2] : vector<1x8x8xf32> to vector<1x8xf32>
      %44 = vector.shape_cast %43 : vector<1x8xf32> to vector<1x8x1xf32>
      %45 = arith.addf %42, %44 : vector<1x8x1xf32>
      %c0_25 = arith.constant 0 : index
      %c0_26 = arith.constant 0 : index
      %c0_27 = arith.constant 0 : index
      %46 = vector.load %arg10[%c0_25, %c0_26, %c0_27] : memref<1x8x1xf32, #tpu.memory_space<vmem>>, vector<1x8x1xf32>
      tpu.vector_store %arg10[%c0_25, %c0_26, %c0_27], %45 {strides = array<i32>} : memref<1x8x1xf32, #tpu.memory_space<vmem>>, vector<1x8x1xf32>,
      %cst_28 = arith.constant dense<0.000000e+00> : vector<1x8x128xf32>
      %47 = tpu.matmul %40, %23, %cst_28 {dimension_numbers = #tpu.dot_dimension_numbers<[2], [1], [1], [2], [0, 0, 0, 1, 1, 2], [0], [0]>} : vector<1x8x8xf32>, vector<1x8x128xf32>, vector<1x8x128xf32> -> vector<1x8x128xf32>
      %c0_29 = arith.constant 0 : index
      %c0_30 = arith.constant 0 : index
      %c0_31 = arith.constant 0 : index
      %48 = vector.load %arg11[%c0_29, %c0_30, %c0_31] : memref<1x8x128xf32, #tpu.memory_space<vmem>>, vector<1x8x128xf32>
      %49 = vector.broadcast %37 : vector<1x8x1xf32> to vector<1x8x128xf32>
      %50 = arith.mulf %49, %48 : vector<1x8x128xf32>
      %51 = arith.addf %50, %47 : vector<1x8x128xf32>
      %c0_32 = arith.constant 0 : index
      %c0_33 = arith.constant 0 : index
      %c0_34 = arith.constant 0 : index
      %52 = vector.load %arg11[%c0_32, %c0_33, %c0_34] : memref<1x8x128xf32, #tpu.memory_space<vmem>>, vector<1x8x128xf32>
      tpu.vector_store %arg11[%c0_32, %c0_33, %c0_34], %51 {strides = array<i32>} : memref<1x8x128xf32, #tpu.memory_space<vmem>>, vector<1x8x128xf32>,
      %c0_35 = arith.constant 0 : index
      %c0_36 = arith.constant 0 : index
      %c0_37 = arith.constant 0 : index
      %53 = vector.load %arg9[%c0_35, %c0_36, %c0_37] : memref<1x8x1xf32, #tpu.memory_space<vmem>>, vector<1x8x1xf32>
      tpu.vector_store %arg9[%c0_35, %c0_36, %c0_37], %35 {strides = array<i32>} : memref<1x8x1xf32, #tpu.memory_space<vmem>>, vector<1x8x1xf32>,
      %c0_38 = arith.constant 0 : index
      %c0_39 = arith.constant 0 : index
      %c0_40 = arith.constant 0 : index
      %54 = vector.load %arg10[%c0_38, %c0_39, %c0_40] : memref<1x8x1xf32, #tpu.memory_space<vmem>>, vector<1x8x1xf32>
      %c0_41 = arith.constant 0 : index
      %c0_42 = arith.constant 0 : index
      %c0_43 = arith.constant 0 : index
      %55 = vector.load %arg11[%c0_41, %c0_42, %c0_43] : memref<1x8x128xf32, #tpu.memory_space<vmem>>, vector<1x8x128xf32>
      %56 = vector.broadcast %54 : vector<1x8x1xf32> to vector<1x8x128xf32>
      %57 = arith.divf %55, %56 : vector<1x8x128xf32>
      %c0_44 = arith.constant 0 : index
      %c0_45 = arith.constant 0 : index
      %c0_46 = arith.constant 0 : index
      %58 = vector.load %arg7[%c0_44, %c0_45, %c0_46] : memref<1x8x128xf32, #tpu.memory_space<vmem>>, vector<1x8x128xf32>
      tpu.vector_store %arg7[%c0_44, %c0_45, %c0_46], %57 {strides = array<i32>} : memref<1x8x128xf32, #tpu.memory_space<vmem>>, vector<1x8x128xf32>,
    } else {
    }
    return
  }
  func.func @transform_0(%arg0: i32, %arg1: i32, %arg2: i32) -> (i32, i32, i32) {
    %c0_i32 = arith.constant 0 : i32
    %c0_i32_0 = arith.constant 0 : i32
    return %arg0, %arg1, %c0_i32 : i32, i32, i32
  }
  func.func @transform_1(%arg0: i32, %arg1: i32, %arg2: i32) -> (i32, i32, i32) {
    %0 = arith.minsi %arg2, %arg1 : i32
    %c0_i32 = arith.constant 0 : i32
    %c0_i32_0 = arith.constant 0 : i32
    return %arg0, %0, %c0_i32 : i32, i32, i32
  }
  func.func @transform_2(%arg0: i32, %arg1: i32, %arg2: i32) -> (i32, i32) {
    %c0_i32 = arith.constant 0 : i32
    %c0_i32_0 = arith.constant 0 : i32
    %c0_i32_1 = arith.constant 0 : i32
    return %c0_i32, %c0_i32_0 : i32, i32
  }
  func.func @transform_3(%arg0: i32, %arg1: i32, %arg2: i32) -> (i32, i32) {
    %c0_i32 = arith.constant 0 : i32
    %c0_i32_0 = arith.constant 0 : i32
    %c0_i32_1 = arith.constant 0 : i32
    return %c0_i32, %c0_i32_0 : i32, i32
  }
  func.func @transform_4(%arg0: i32, %arg1: i32, %arg2: i32) -> (i32, i32, i32) {
    %c0_i32 = arith.constant 0 : i32
    %c0_i32_0 = arith.constant 0 : i32
    return %arg0, %arg1, %c0_i32 : i32, i32, i32
  }
}

</mosaic_0001>

<llo_original>
// kernel: single_head_self_attention.1
$region0: #{single_head_self_attention.1}
  #allocation0 [shape = 'u32[]', space=smem, size = 0x4, offset = 0x4, fixed_abs, tag = 'smem constant byte address 0x4 - core index']
  #allocation1 [shape = 'u32[144,128]{1,0:T(1,128)}', space=vmem, size = 0x12000, scoped, tag = 'internal scratch']
  #allocation2 [shape = 'f32[1,8,128]{2,1,0:T(8,128)}', space=vmem, size = 0x1000, scoped, tag = 'scratch operand']
  #allocation3 [shape = 'f32[1,8,1]{2,1,0:T(8,128)}', space=vmem, size = 0x1000, scoped, tag = 'scratch operand']
  #allocation4 [shape = 'f32[1,8,1]{2,1,0:T(8,128)}', space=vmem, size = 0x1000, scoped, tag = 'scratch operand']
  #allocation5 [shape = 'f32[1,8,128]{2,1,0:T(8,128)}', space=vmem, size = 0x1000, scoped, tag = 'scratch operand']
  %s0 = inlined_call_operand.vmem [shape: f32[2,8,32], index: 0, kind: input, shape index: {}, may-alias: {0,1}]
  %s1 = inlined_call_operand.vmem [shape: f32[2,8,32], index: 1, kind: input, shape index: {}, may-alias: {0,1}]
  %s2 = inlined_call_operand.vmem [shape: f32[32,384], index: 2, kind: input, shape index: {}]
  %s3 = inlined_call_operand.vmem [shape: f32[1,384], index: 3, kind: input, shape index: {}]
  %s4 = inlined_call_operand.hbm [shape: f32[2,8,128], index: 4, kind: output, shape index: {}]
  %s5 = sld [smem:[#allocation0]]
  $region61: #{single_head_self_attention.1} parent=0
    _
  %s7 = ssub.s32 1, %s5
  %s8 = scalar_select 0, %s7, %s5
  $region1: #{single_head_self_attention.1} parent=0
    #allocation6 [shape = 'u8[8192]{0}', space=vmem, size = 0x2000, scoped, tag = 'output window, operand 0']
    #allocation7 [shape = 's32[2]{0}', space=sflag, size = 0x8, scoped, tag = 'scoped memory for single_head_self_attention.1']
    %9 = vsyncpa [#allocation7], 0
    %s10 = scalar_lea.sflag [#allocation7], 1
    %11 = vsyncpa %s10, 0
    loop: start=0, step=1, limit=4
    $region2: #{single_head_self_attention.1} parent=1 // loop_pre_header
      _
    $region3: #{single_head_self_attention.1} parent=1 // loop_header
      %s13 = sphi 0, %s17
      %p14 = scmp.ge.s32.totalorder %s13, 4
      %s20 = sphi 0, %s39
      %s21 = sphi 0, %s35
      %s22 = sphi 0, %s31
      %s23 = sphi 0, %s20
      %s24 = sphi 0, %s21
      %s25 = sphi 0, %s22
      %s26 = sphi 0, %s23
      %s27 = sphi 0, %s24
      %s28 = sphi 0, %s25
      %s44 = sphi 0, %s46
      %s47 = sphi 0, %s44
      %s48 = sphi 0, %s47
      %s64 = sphi 0, %s48
      %s76 = sphi 0, %s78
      %s79 = sphi 0, %s76
      %s80 = sphi 0, %s79
      %s96 = sphi 0, %s80
      %s100 = sphi 0, %s100
      %s102 = sphi 0, %s100
      %s103 = sphi 0, %s102
      %s117 = sphi 0, %s103
      %s121 = sphi 0, %s121
      %s123 = sphi 0, %s121
      %s124 = sphi 0, %s123
      %s138 = sphi 0, %s124
      %s146 = sphi 0, %s148
      %s149 = sphi 0, %s146
      %s150 = sphi 0, %s149
      %s166 = sphi 0, %s150
    $region4: #{single_head_self_attention.1} parent=1 // loop_header_branch
      %16 = sbr.rel (%p14) target = $region8
    $region5: #{single_head_self_attention.1} parent=1 // loop_body
      %s18 = ssub.s32 %s13, 1
      %s19 = ssub.s32 %s13, 2
      %s29 = sadd.s32 1, %s22
      %p30 = scmp.ge.s32.totalorder %s29, 1
      %s31 = scalar_select %p30, 0, %s29
      %s32 = sadd.s32 1, %s21
      %s33 = scalar_select %p30, %s32, %s21
      %p34 = scmp.ge.s32.totalorder %s33, 1
      %s35 = scalar_select %p34, 0, %s33
      %s36 = sadd.s32 1, %s20
      %s37 = scalar_select %p34, %s36, %s20
      %p38 = scmp.ge.s32.totalorder %s37, 2
      %s39 = scalar_select %p38, 0, %s37
      %s40 = ssub.s32 %s20, %s39
      %s41 = ssub.s32 %s21, %s35
      %s42 = sor.u32 %s40, %s41
      %p43 = scmp.eq.s32.totalorder %s42, 0
      %s45 = sadd.s32 %s44, 1
      %s46 = scalar_select %p43, %s44, %s45
      %p49 = pneg %p43
      %p50 = scmp.eq.s32.totalorder %s13, 1
      %p51 = por %p49, %p50
      %p52 = scmp.ne.s32.totalorder %s44, %s47
      %p53 = scmp.eq.s32.totalorder %s13, 0
      %p54 = por %p52, %p53
      %p55 = scmp.ne.s32.totalorder %s44, %s47
      %p56 = scmp.eq.s32.totalorder %s18, 1
      %p57 = por %p55, %p56
      %p58 = scmp.ne.s32.totalorder %s47, %s48
      %p59 = scmp.eq.s32.totalorder %s18, 0
      %p60 = por %p58, %p59
      %p61 = scmp.ne.s32.totalorder %s47, %s48
      %p62 = scmp.eq.s32.totalorder %s19, 1
      %p63 = por %p61, %p62
      %p65 = scmp.ne.s32.totalorder %s48, %s64
      %p66 = scmp.eq.s32.totalorder %s19, 0
      %p67 = por %p65, %p66
      %p68 = scmp.lt.s32.totalorder %s22, %s21
      %s69 = scalar_select %p68, %s22, %s21
      %p70 = scmp.lt.s32.totalorder %s31, %s35
      %s71 = scalar_select %p70, %s31, %s35
      %s72 = ssub.s32 %s20, %s39
      %s73 = ssub.s32 %s69, %s71
      %s74 = sor.u32 %s72, %s73
      %p75 = scmp.eq.s32.totalorder %s74, 0
      %s77 = sadd.s32 %s76, 1
      %s78 = scalar_select %p75, %s76, %s77
      %p81 = pneg %p75
      %p82 = scmp.eq.s32.totalorder %s13, 1
      %p83 = por %p81, %p82
      %p84 = scmp.ne.s32.totalorder %s76, %s79
      %p85 = scmp.eq.s32.totalorder %s13, 0
      %p86 = por %p84, %p85
      %p87 = scmp.ne.s32.totalorder %s76, %s79
      %p88 = scmp.eq.s32.totalorder %s18, 1
      %p89 = por %p87, %p88
      %p90 = scmp.ne.s32.totalorder %s79, %s80
      %p91 = scmp.eq.s32.totalorder %s18, 0
      %p92 = por %p90, %p91
      %p93 = scmp.ne.s32.totalorder %s79, %s80
      %p94 = scmp.eq.s32.totalorder %s19, 1
      %p95 = por %p93, %p94
      %p97 = scmp.ne.s32.totalorder %s80, %s96
      %p98 = scmp.eq.s32.totalorder %s19, 0
      %p99 = por %p97, %p98
      %s101 = sadd.s32 %s100, 1
      %p104 = scmp.eq.s32.totalorder %s13, 1
      %p105 = scmp.ne.s32.totalorder %s100, %s102
      %p106 = scmp.eq.s32.totalorder %s13, 0
      %p107 = por %p105, %p106
      %p108 = scmp.ne.s32.totalorder %s100, %s102
      %p109 = scmp.eq.s32.totalorder %s18, 1
      %p110 = por %p108, %p109
      %p111 = scmp.ne.s32.totalorder %s102, %s103
      %p112 = scmp.eq.s32.totalorder %s18, 0
      %p113 = por %p111, %p112
      %p114 = scmp.ne.s32.totalorder %s102, %s103
      %p115 = scmp.eq.s32.totalorder %s19, 1
      %p116 = por %p114, %p115
      %p118 = scmp.ne.s32.totalorder %s103, %s117
      %p119 = scmp.eq.s32.totalorder %s19, 0
      %p120 = por %p118, %p119
      %s122 = sadd.s32 %s121, 1
      %p125 = scmp.eq.s32.totalorder %s13, 1
      %p126 = scmp.ne.s32.totalorder %s121, %s123
      %p127 = scmp.eq.s32.totalorder %s13, 0
      %p128 = por %p126, %p127
      %p129 = scmp.ne.s32.totalorder %s121, %s123
      %p130 = scmp.eq.s32.totalorder %s18, 1
      %p131 = por %p129, %p130
      %p132 = scmp.ne.s32.totalorder %s123, %s124
      %p133 = scmp.eq.s32.totalorder %s18, 0
      %p134 = por %p132, %p133
      %p135 = scmp.ne.s32.totalorder %s123, %s124
      %p136 = scmp.eq.s32.totalorder %s19, 1
      %p137 = por %p135, %p136
      %p139 = scmp.ne.s32.totalorder %s124, %s138
      %p140 = scmp.eq.s32.totalorder %s19, 0
      %p141 = por %p139, %p140
      %s142 = ssub.s32 %s20, %s39
      %s143 = ssub.s32 %s21, %s35
      %s144 = sor.u32 %s142, %s143
      %p145 = scmp.eq.s32.totalorder %s144, 0
      %s147 = sadd.s32 %s146, 1
      %s148 = scalar_select %p145, %s146, %s147
      %p151 = pneg %p145
      %p152 = scmp.eq.s32.totalorder %s13, 1
      %p153 = por %p151, %p152
      %p154 = scmp.ne.s32.totalorder %s146, %s149
      %p155 = scmp.eq.s32.totalorder %s13, 0
      %p156 = por %p154, %p155
      %p157 = scmp.ne.s32.totalorder %s146, %s149
      %p158 = scmp.eq.s32.totalorder %s18, 1
      %p159 = por %p157, %p158
      %p160 = scmp.ne.s32.totalorder %s149, %s150
      %p161 = scmp.eq.s32.totalorder %s18, 0
      %p162 = por %p160, %p161
      %p163 = scmp.ne.s32.totalorder %s149, %s150
      %p164 = scmp.eq.s32.totalorder %s19, 1
      %p165 = por %p163, %p164
      %p167 = scmp.ne.s32.totalorder %s150, %s166
      %p168 = scmp.eq.s32.totalorder %s19, 0
      %p169 = por %p167, %p168
      %p170 = scmp.le.s32.totalorder 1, %s13
      %p171 = scmp.lt.s32.totalorder %s13, 3
      %p172 = pnand %p170, %p171
      %p173 = pneg %p172
      // Predicated region
      $region9: #{single_head_self_attention.1} parent=5 // pred_check
        _
      $region10: #{single_head_self_attention.1} parent=5 // pred_check_branch
        %175 = sbr.rel (%p172) target = $region12
      $region11: #{single_head_self_attention.1} parent=5 // pred_region
        %s176 = ssub.s32 %s13, 1
        // Predicated region
        $region13: #{single_head_self_attention.1} parent=11 // pred_check
          %p177 = pneg %p113
        $region14: #{single_head_self_attention.1} parent=11 // pred_check_branch
          %179 = sbr.rel (%p177) target = $region16
        $region15: #{single_head_self_attention.1} parent=11 // pred_region
          _
        $region16: #{single_head_self_attention.1} parent=11 // pred_fallthru
          _
        // Predicated region
        $region17: #{single_head_self_attention.1} parent=11 // pred_check
          %p180 = pneg %p134
        $region18: #{single_head_self_attention.1} parent=11 // pred_check_branch
          %182 = sbr.rel (%p180) target = $region20
        $region19: #{single_head_self_attention.1} parent=11 // pred_region
          _
        $region20: #{single_head_self_attention.1} parent=11 // pred_fallthru
          _
      $region12: #{single_head_self_attention.1} parent=5 // pred_fallthru
        _
      %p183 = scmp.lt.s32.totalorder %s13, 2
      // Predicated region
      $region21: #{single_head_self_attention.1} parent=5 // pred_check
        %p184 = pneg %p183
      $region22: #{single_head_self_attention.1} parent=5 // pred_check_branch
        %186 = sbr.rel (%p184) target = $region24
      $region23: #{single_head_self_attention.1} parent=5 // pred_region
        // Predicated region
        $region25: #{single_head_self_attention.1} parent=23 // pred_check
          %p187 = pneg %p54
        $region26: #{single_head_self_attention.1} parent=23 // pred_check_branch
          %189 = sbr.rel (%p187) target = $region28
        $region27: #{single_head_self_attention.1} parent=23 // pred_region
          %p190 = scmp.lt.s32.totalorder %s20, 1
          %s191 = scalar_select %p190, %s20, 1
          %p192 = scmp.lt.s32.totalorder %s21, 0
          %s193 = scalar_select %p192, %s21, 0
          %s194 = sadd.s32 %s193, %s191
          %s195 = smul.addr %s194, 8
          %s196 = scalar_lea.vmem %s0, %s195
        $region28: #{single_head_self_attention.1} parent=23 // pred_fallthru
          _
        // Predicated region
        $region29: #{single_head_self_attention.1} parent=23 // pred_check
          %p197 = pneg %p86
        $region30: #{single_head_self_attention.1} parent=23 // pred_check_branch
          %199 = sbr.rel (%p197) target = $region32
        $region31: #{single_head_self_attention.1} parent=23 // pred_region
          %p200 = scmp.lt.s32.totalorder %s22, %s21
          %s201 = scalar_select %p200, %s22, %s21
          %p202 = scmp.lt.s32.totalorder %s20, 1
          %s203 = scalar_select %p202, %s20, 1
          %p204 = scmp.lt.s32.totalorder %s201, 0
          %s205 = scalar_select %p204, %s201, 0
          %s206 = sadd.s32 %s205, %s203
          %s207 = smul.addr %s206, 8
          %s208 = scalar_lea.vmem %s1, %s207
          %p209 = scmp.lt.s32.totalorder %s22, %s21
          %s210 = scalar_select %p209, %s22, %s21
        $region32: #{single_head_self_attention.1} parent=23 // pred_fallthru
          _
      $region24: #{single_head_self_attention.1} parent=5 // pred_fallthru
        _
      %p211 = scmp.le.s32.totalorder 1, %s13
      %p212 = scmp.lt.s32.totalorder %s13, 3
      %p213 = pnand %p211, %p212
      %p214 = pneg %p213
      // Predicated region
      $region33: #{single_head_self_attention.1} parent=5 // pred_check
        _
      $region34: #{single_head_self_attention.1} parent=5 // pred_check_branch
        %216 = sbr.rel (%p213) target = $region36
      $region35: #{single_head_self_attention.1} parent=5 // pred_region
        %s217 = ssub.s32 %s13, 1
        %p218 = scmp.lt.s32.totalorder %s23, 1
        %s219 = scalar_select %p218, %s23, 1
        %p220 = scmp.lt.s32.totalorder %s24, 0
        %s221 = scalar_select %p220, %s24, 0
        %s222 = sadd.s32 %s221, %s219
        %s223 = smul.addr %s222, 8
        %s224 = scalar_lea.vmem %s0, %s223
        %p225 = pneg %p60
        %p226 = pneg %p57
        %p227 = scmp.lt.s32.totalorder %s25, %s24
        %s228 = scalar_select %p227, %s25, %s24
        %p229 = scmp.lt.s32.totalorder %s23, 1
        %s230 = scalar_select %p229, %s23, 1
        %p231 = scmp.lt.s32.totalorder %s228, 0
        %s232 = scalar_select %p231, %s228, 0
        %s233 = sadd.s32 %s232, %s230
        %s234 = smul.addr %s233, 8
        %s235 = scalar_lea.vmem %s1, %s234
        %p236 = pneg %p92
        %p237 = pneg %p89
        %p238 = pneg %p113
        %p239 = pneg %p110
        %p240 = pneg %p134
        %p241 = pneg %p131
        %p242 = pneg %p162
        %p243 = pneg %p159
        %s244 = sand.u32 %s149, 1
        %s245 = scalar_lea.sflag [#allocation7], %s244
        %s246 = sand.u32 %s149, 1
        %s247 = smul.addr %s246, 8
        %s248 = scalar_lea.vmem [#allocation6], %s247
        %p249 = scmp.lt.s32.totalorder %s23, 1
        %s250 = scalar_select %p249, %s23, 1
        %p251 = scmp.lt.s32.totalorder %s24, 0
        %s252 = scalar_select %p251, %s24, 0
        %s253 = sadd.s32 %s252, %s250
        %s254 = smul.addr %s253, 8
        %s255 = scalar_lea.vmem %s0, %s254
        %p256 = scmp.lt.s32.totalorder %s25, %s24
        %s257 = scalar_select %p256, %s25, %s24
        %p258 = scmp.lt.s32.totalorder %s23, 1
        %s259 = scalar_select %p258, %s23, 1
        %p260 = scmp.lt.s32.totalorder %s257, 0
        %s261 = scalar_select %p260, %s257, 0
        %s262 = sadd.s32 %s261, %s259
        %s263 = smul.addr %s262, 8
        %s264 = scalar_lea.vmem %s1, %s263
        %p265 = scmp.lt.s32.totalorder %s25, %s24
        %s266 = scalar_select %p265, %s25, %s24
        %p267 = scmp.eq.s32.totalorder %s25, 0
        // Predicated region
        $region37: #{single_head_self_attention.1} parent=35 // pred_check
          %p268 = pneg %p267
        $region38: #{single_head_self_attention.1} parent=35 // pred_check_branch
          %270 = sbr.rel (%p268) target = $region40
        $region39: #{single_head_self_attention.1} parent=35 // pred_region
          %v271 = vld [vmem:[%s255] sm:$0xff]
          %v272 = vld [vmem:[%s2] sm:$0xff]
          %v273 = vld [vmem:[%s2 + $0x18] sm:$0xff]
          %v274 = vld [vmem:[%s2 + $0x30] sm:$0xff]
          %v275 = vld [vmem:[%s2 + $0x48] sm:$0xff]
          %v276 = vld [vmem:[%s3] sm:$0x1]
          %v278 = vlaneseq
          %v279 = vshrl.u32 %v278, 7
          %v280 = vsub.s32 0, %v279
          %v281 = vrot.slane %v276, %v280
          %vm283 = vcmask 261120
          %v285 = vsel %vm283, %v271, 0
          %287 = vmatprep.subr.mxu0 0.0
          %288 = vmatpush1.msra.mxu0 0.0
          %289 = vmatprep.subr.mxu0 0.0
          %290 = vmatpush1.msra.mxu0 0.0
          %291 = vmatprep.subr.mxu0 0.0
          %292 = vmatpush1.msra.mxu0 0.0
          %293 = vmatprep.subr.mxu0 0.0
          %294 = vmatpush1.msra.mxu0 0.0
          %295 = vmatprep.subr.mxu0 0.0
          %296 = vmatpush1.msra.mxu0 0.0
          %297 = vmatprep.subr.mxu0 0.0
          %298 = vmatpush1.msra.mxu0 0.0
          %299 = vmatprep.subr.mxu0 0.0
          %300 = vmatpush1.msra.mxu0 0.0
          %301 = vmatprep.subr.mxu0 0.0
          %302 = vmatpush1.msra.mxu0 0.0
          %303 = vmatprep.subr.mxu0 0.0
          %304 = vmatpush1.msra.mxu0 0.0
          %305 = vmatprep.subr.mxu0 0.0
          %306 = vmatpush1.msra.mxu0 0.0
          %307 = vmatprep.subr.mxu0 0.0
          %308 = vmatpush1.msra.mxu0 0.0
          %309 = vmatprep.subr.mxu0 0.0
          %310 = vmatpush1.msra.mxu0 0.0
          %311 = vmatprep.subr.mxu0 0.0
          %312 = vmatpush1.msra.mxu0 %v275
          %313 = vmatprep.subr.mxu0 0.0
          %314 = vmatpush1.msra.mxu0 %v274
          %315 = vmatprep.subr.mxu0 0.0
          %316 = vmatpush1.msra.mxu0 %v273
          %317 = vmatprep.subr.mxu0 0.0
          %318 = vmatpush1.msra.mxu0 %v272
          %319 = vmatprep.subr.mxu0 0.0
          %320 = vmatpush2.msra.mxu0 0.0
          %321 = vmatprep.subr.mxu0 0.0
          %322 = vmatpush2.msra.mxu0 0.0
          %323 = vmatprep.subr.mxu0 0.0
          %324 = vmatpush2.msra.mxu0 0.0
          %325 = vmatprep.subr.mxu0 0.0
          %326 = vmatpush2.msra.mxu0 0.0
          %327 = vmatprep.subr.mxu0 0.0
          %328 = vmatpush2.msra.mxu0 0.0
          %329 = vmatprep.subr.mxu0 0.0
          %330 = vmatpush2.msra.mxu0 0.0
          %331 = vmatprep.subr.mxu0 0.0
          %332 = vmatpush2.msra.mxu0 0.0
          %333 = vmatprep.subr.mxu0 0.0
          %334 = vmatpush2.msra.mxu0 0.0
          %335 = vmatprep.subr.mxu0 0.0
          %336 = vmatpush2.msra.mxu0 0.0
          %337 = vmatprep.subr.mxu0 0.0
          %338 = vmatpush2.msra.mxu0 0.0
          %339 = vmatprep.subr.mxu0 0.0
          %340 = vmatpush2.msra.mxu0 0.0
          %341 = vmatprep.subr.mxu0 0.0
          %342 = vmatpush2.msra.mxu0 0.0
          %343 = vmatprep.subr.mxu0 0.0
          %344 = vmatpush2.msra.mxu0 0.0
          %345 = vmatprep.subr.mxu0 0.0
          %346 = vmatpush2.msra.mxu0 0.0
          %347 = vmatprep.subr.mxu0 0.0
          %348 = vmatpush2.msra.mxu0 0.0
          %349 = vmatprep.subr.mxu0 0.0
          %350 = vmatpush2.msra.mxu0 0.0
          %351 = vmatprep.mubr.f32.mxu0 0.0
          %352 = vmatmul.mubr.f32.gmra.mxu0 %v285
          %v353 = vpop.f32.mrf.mxu0
          %v354 = vadd.f32 %v281, %v353
          %v355 = vpop.f32.mrf.mxu0
          %356 = vdwg.mxu0
          %357 = vst [vmem:[#allocation2] sm:$0xff] %v354
          %vm358 = vcmask 7168
          %359 = vst.msk [vmem:[#allocation3] sm:$0xff] %vm358, -inf
          %360 = vst.msk [vmem:[#allocation4] sm:$0xff] %vm358, 0.0
          %361 = vst [vmem:[#allocation5] sm:$0xff] 0.0
        $region40: #{single_head_self_attention.1} parent=35 // pred_fallthru
          _
        %p362 = scmp.lt.s32.totalorder %s25, %s24
        // Predicated region
        $region41: #{single_head_self_attention.1} parent=35 // pred_check
          %p363 = pneg %p362
        $region42: #{single_head_self_attention.1} parent=35 // pred_check_branch
          %365 = sbr.rel (%p363) target = $region44
        $region43: #{single_head_self_attention.1} parent=35 // pred_region
          %v366 = vld [vmem:[%s264] sm:$0xff]
          %v367 = vld [vmem:[%s2 + $0x8] sm:$0xff]
          %v368 = vld [vmem:[%s2 + $0x20] sm:$0xff]
          %v369 = vld [vmem:[%s2 + $0x38] sm:$0xff]
          %v370 = vld [vmem:[%s2 + $0x50] sm:$0xff]
          %v371 = vld [vmem:[%s3 + $0x1] sm:$0x1]
          %v373 = vlaneseq
          %v374 = vshrl.u32 %v373, 7
          %v375 = vsub.s32 0, %v374
          %v376 = vrot.slane %v371, %v375
          %vm378 = vcmask 261120
          %v380 = vsel %vm378, %v366, 0
          %382 = vmatprep.subr.mxu0 0.0
          %383 = vmatpush1.msra.mxu0 0.0
          %384 = vmatprep.subr.mxu0 0.0
          %385 = vmatpush1.msra.mxu0 0.0
          %386 = vmatprep.subr.mxu0 0.0
          %387 = vmatpush1.msra.mxu0 0.0
          %388 = vmatprep.subr.mxu0 0.0
          %389 = vmatpush1.msra.mxu0 0.0
          %390 = vmatprep.subr.mxu0 0.0
          %391 = vmatpush1.msra.mxu0 0.0
          %392 = vmatprep.subr.mxu0 0.0
          %393 = vmatpush1.msra.mxu0 0.0
          %394 = vmatprep.subr.mxu0 0.0
          %395 = vmatpush1.msra.mxu0 0.0
          %396 = vmatprep.subr.mxu0 0.0
          %397 = vmatpush1.msra.mxu0 0.0
          %398 = vmatprep.subr.mxu0 0.0
          %399 = vmatpush1.msra.mxu0 0.0
          %400 = vmatprep.subr.mxu0 0.0
          %401 = vmatpush1.msra.mxu0 0.0
          %402 = vmatprep.subr.mxu0 0.0
          %403 = vmatpush1.msra.mxu0 0.0
          %404 = vmatprep.subr.mxu0 0.0
          %405 = vmatpush1.msra.mxu0 0.0
          %406 = vmatprep.subr.mxu0 0.0
          %407 = vmatpush1.msra.mxu0 %v370
          %408 = vmatprep.subr.mxu0 0.0
          %409 = vmatpush1.msra.mxu0 %v369
          %410 = vmatprep.subr.mxu0 0.0
          %411 = vmatpush1.msra.mxu0 %v368
          %412 = vmatprep.subr.mxu0 0.0
          %413 = vmatpush1.msra.mxu0 %v367
          %414 = vmatprep.subr.mxu0 0.0
          %415 = vmatpush2.msra.mxu0 0.0
          %416 = vmatprep.subr.mxu0 0.0
          %417 = vmatpush2.msra.mxu0 0.0
          %418 = vmatprep.subr.mxu0 0.0
          %419 = vmatpush2.msra.mxu0 0.0
          %420 = vmatprep.subr.mxu0 0.0
          %421 = vmatpush2.msra.mxu0 0.0
          %422 = vmatprep.subr.mxu0 0.0
          %423 = vmatpush2.msra.mxu0 0.0
          %424 = vmatprep.subr.mxu0 0.0
          %425 = vmatpush2.msra.mxu0 0.0
          %426 = vmatprep.subr.mxu0 0.0
          %427 = vmatpush2.msra.mxu0 0.0
          %428 = vmatprep.subr.mxu0 0.0
          %429 = vmatpush2.msra.mxu0 0.0
          %430 = vmatprep.subr.mxu0 0.0
          %431 = vmatpush2.msra.mxu0 0.0
          %432 = vmatprep.subr.mxu0 0.0
          %433 = vmatpush2.msra.mxu0 0.0
          %434 = vmatprep.subr.mxu0 0.0
          %435 = vmatpush2.msra.mxu0 0.0
          %436 = vmatprep.subr.mxu0 0.0
          %437 = vmatpush2.msra.mxu0 0.0
          %438 = vmatprep.subr.mxu0 0.0
          %439 = vmatpush2.msra.mxu0 0.0
          %440 = vmatprep.subr.mxu0 0.0
          %441 = vmatpush2.msra.mxu0 0.0
          %442 = vmatprep.subr.mxu0 0.0
          %443 = vmatpush2.msra.mxu0 0.0
          %444 = vmatprep.subr.mxu0 0.0
          %445 = vmatpush2.msra.mxu0 0.0
          %446 = vmatprep.mubr.f32.mxu0 0.0
          %447 = vmatmul.mubr.f32.gmra.mxu0 %v380
          %v448 = vpop.f32.mrf.mxu0
          %v449 = vadd.f32 %v376, %v448
          %v450 = vpop.f32.mrf.mxu0
          %451 = vdwg.mxu0
          %v452 = vld [vmem:[%s2 + $0x10] sm:$0xff]
          %v453 = vld [vmem:[%s2 + $0x28] sm:$0xff]
          %v454 = vld [vmem:[%s2 + $0x40] sm:$0xff]
          %v455 = vld [vmem:[%s2 + $0x58] sm:$0xff]
          %v456 = vld [vmem:[%s3 + $0x2] sm:$0x1]
          %v458 = vlaneseq
          %v459 = vshrl.u32 %v458, 7
          %v460 = vsub.s32 0, %v459
          %v461 = vrot.slane %v456, %v460
          %463 = vmatprep.subr.mxu0 0.0
          %464 = vmatpush1.msra.mxu0 0.0
          %465 = vmatprep.subr.mxu0 0.0
          %466 = vmatpush1.msra.mxu0 0.0
          %467 = vmatprep.subr.mxu0 0.0
          %468 = vmatpush1.msra.mxu0 0.0
          %469 = vmatprep.subr.mxu0 0.0
          %470 = vmatpush1.msra.mxu0 0.0
          %471 = vmatprep.subr.mxu0 0.0
          %472 = vmatpush1.msra.mxu0 0.0
          %473 = vmatprep.subr.mxu0 0.0
          %474 = vmatpush1.msra.mxu0 0.0
          %475 = vmatprep.subr.mxu0 0.0
          %476 = vmatpush1.msra.mxu0 0.0
          %477 = vmatprep.subr.mxu0 0.0
          %478 = vmatpush1.msra.mxu0 0.0
          %479 = vmatprep.subr.mxu0 0.0
          %480 = vmatpush1.msra.mxu0 0.0
          %481 = vmatprep.subr.mxu0 0.0
          %482 = vmatpush1.msra.mxu0 0.0
          %483 = vmatprep.subr.mxu0 0.0
          %484 = vmatpush1.msra.mxu0 0.0
          %485 = vmatprep.subr.mxu0 0.0
          %486 = vmatpush1.msra.mxu0 0.0
          %487 = vmatprep.subr.mxu0 0.0
          %488 = vmatpush1.msra.mxu0 %v455
          %489 = vmatprep.subr.mxu0 0.0
          %490 = vmatpush1.msra.mxu0 %v454
          %491 = vmatprep.subr.mxu0 0.0
          %492 = vmatpush1.msra.mxu0 %v453
          %493 = vmatprep.subr.mxu0 0.0
          %494 = vmatpush1.msra.mxu0 %v452
          %495 = vmatprep.subr.mxu0 0.0
          %496 = vmatpush2.msra.mxu0 0.0
          %497 = vmatprep.subr.mxu0 0.0
          %498 = vmatpush2.msra.mxu0 0.0
          %499 = vmatprep.subr.mxu0 0.0
          %500 = vmatpush2.msra.mxu0 0.0
          %501 = vmatprep.subr.mxu0 0.0
          %502 = vmatpush2.msra.mxu0 0.0
          %503 = vmatprep.subr.mxu0 0.0
          %504 = vmatpush2.msra.mxu0 0.0
          %505 = vmatprep.subr.mxu0 0.0
          %506 = vmatpush2.msra.mxu0 0.0
          %507 = vmatprep.subr.mxu0 0.0
          %508 = vmatpush2.msra.mxu0 0.0
          %509 = vmatprep.subr.mxu0 0.0
          %510 = vmatpush2.msra.mxu0 0.0
          %511 = vmatprep.subr.mxu0 0.0
          %512 = vmatpush2.msra.mxu0 0.0
          %513 = vmatprep.subr.mxu0 0.0
          %514 = vmatpush2.msra.mxu0 0.0
          %515 = vmatprep.subr.mxu0 0.0
          %516 = vmatpush2.msra.mxu0 0.0
          %517 = vmatprep.subr.mxu0 0.0
          %518 = vmatpush2.msra.mxu0 0.0
          %519 = vmatprep.subr.mxu0 0.0
          %520 = vmatpush2.msra.mxu0 0.0
          %521 = vmatprep.subr.mxu0 0.0
          %522 = vmatpush2.msra.mxu0 0.0
          %523 = vmatprep.subr.mxu0 0.0
          %524 = vmatpush2.msra.mxu0 0.0
          %525 = vmatprep.subr.mxu0 0.0
          %526 = vmatpush2.msra.mxu0 0.0
          %527 = vmatprep.mubr.f32.mxu0 0.0
          %528 = vmatmul.mubr.f32.gmra.mxu0 %v380
          %v529 = vpop.f32.mrf.mxu0
          %v530 = vadd.f32 %v461, %v529
          %v531 = vpop.f32.mrf.mxu0
          %532 = vdwg.mxu0
          %v533 = vld [vmem:[#allocation2] sm:$0xff]
          %534 = vmatprep.subr.mxu0 0.0
          %535 = vmatpush1.xpose.msra.mxu0 0.0
          %536 = vmatprep.subr.mxu0 0.0
          %537 = vmatpush1.xpose.msra.mxu0 0.0
          %538 = vmatprep.subr.mxu0 0.0
          %539 = vmatpush1.xpose.msra.mxu0 0.0
          %540 = vmatprep.subr.mxu0 0.0
          %541 = vmatpush1.xpose.msra.mxu0 0.0
          %542 = vmatprep.subr.mxu0 0.0
          %543 = vmatpush1.xpose.msra.mxu0 0.0
          %544 = vmatprep.subr.mxu0 0.0
          %545 = vmatpush1.xpose.msra.mxu0 0.0
          %546 = vmatprep.subr.mxu0 0.0
          %547 = vmatpush1.xpose.msra.mxu0 0.0
          %548 = vmatprep.subr.mxu0 0.0
          %549 = vmatpush1.xpose.msra.mxu0 0.0
          %550 = vmatprep.subr.mxu0 0.0
          %551 = vmatpush1.xpose.msra.mxu0 0.0
          %552 = vmatprep.subr.mxu0 0.0
          %553 = vmatpush1.xpose.msra.mxu0 0.0
          %554 = vmatprep.subr.mxu0 0.0
          %555 = vmatpush1.xpose.msra.mxu0 0.0
          %556 = vmatprep.subr.mxu0 0.0
          %557 = vmatpush1.xpose.msra.mxu0 0.0
          %558 = vmatprep.subr.mxu0 0.0
          %559 = vmatpush1.xpose.msra.mxu0 0.0
          %560 = vmatprep.subr.mxu0 0.0
          %561 = vmatpush1.xpose.msra.mxu0 0.0
          %562 = vmatprep.subr.mxu0 0.0
          %563 = vmatpush1.xpose.msra.mxu0 0.0
          %564 = vmatprep.subr.mxu0 0.0
          %565 = vmatpush1.xpose.msra.mxu0 %v449
          %566 = vmatprep.subr.mxu0 0.0
          %567 = vmatpush2.xpose.msra.mxu0 0.0
          %568 = vmatprep.subr.mxu0 0.0
          %569 = vmatpush2.xpose.msra.mxu0 0.0
          %570 = vmatprep.subr.mxu0 0.0
          %571 = vmatpush2.xpose.msra.mxu0 0.0
          %572 = vmatprep.subr.mxu0 0.0
          %573 = vmatpush2.xpose.msra.mxu0 0.0
          %574 = vmatprep.subr.mxu0 0.0
          %575 = vmatpush2.xpose.msra.mxu0 0.0
          %576 = vmatprep.subr.mxu0 0.0
          %577 = vmatpush2.xpose.msra.mxu0 0.0
          %578 = vmatprep.subr.mxu0 0.0
          %579 = vmatpush2.xpose.msra.mxu0 0.0
          %580 = vmatprep.subr.mxu0 0.0
          %581 = vmatpush2.xpose.msra.mxu0 0.0
          %582 = vmatprep.subr.mxu0 0.0
          %583 = vmatpush2.xpose.msra.mxu0 0.0
          %584 = vmatprep.subr.mxu0 0.0
          %585 = vmatpush2.xpose.msra.mxu0 0.0
          %586 = vmatprep.subr.mxu0 0.0
          %587 = vmatpush2.xpose.msra.mxu0 0.0
          %588 = vmatprep.subr.mxu0 0.0
          %589 = vmatpush2.xpose.msra.mxu0 0.0
          %590 = vmatprep.subr.mxu0 0.0
          %591 = vmatpush2.xpose.msra.mxu0 0.0
          %592 = vmatprep.subr.mxu0 0.0
          %593 = vmatpush2.xpose.msra.mxu0 0.0
          %594 = vmatprep.subr.mxu0 0.0
          %595 = vmatpush2.xpose.msra.mxu0 0.0
          %596 = vmatprep.subr.mxu0 0.0
          %597 = vmatpush2.xpose.msra.mxu0 0.0
          %598 = vmatprep.mubr.f32.mxu0 0.0
          %599 = vmatmul.mubr.f32.gmra.mxu0 %v533
          %v600 = vpop.f32.mrf.mxu0
          %v601 = vadd.f32 0.0, %v600
          %v602 = vpop.f32.mrf.mxu0
          %603 = vdwg.mxu0
          %v604 = vld [vmem:[#allocation3] sm:$0xff]
          %vm605 = vcmask 64512
          %v606 = vsel %vm605, %v601, -inf
          %607 = vmax.xlane.f32.xlu0 %v606
          %v608 = vpop.xlane.xlu0 %607
          %v609 = vmax.f32 %v604, %v608
          %v610 = vsub.f32 %v604, %v609
          %v611 = vmul.f32 %v610, 1.442695
          %v612 = vpow.pop %v611
          %614 = vset.pattern.permute.xlu0 0
          %615 = vperm.xlu0 %614, %v609
          %v616 = vpop.permute.xlu0 %615
          %v618 = vsub.f32 %v601, %v616
          %v619 = vmul.f32 %v618, 1.442695
          %v620 = vpow.pop %v619
          %v621 = vld [vmem:[#allocation4] sm:$0xff]
          %v622 = vmul.f32 %v612, %v621
          %v623 = vsel %vm605, %v620, 0.0
          %624 = vadd.xlane.f32.xlu0 %v623
          %v625 = vpop.xlane.xlu0 %624
          %v626 = vadd.f32 %v622, %v625
          %vm627 = vcmask 7168
          %628 = vst.msk [vmem:[#allocation4] sm:$0xff] %vm627, %v626
          %v630 = vsel %vm605, %v620, 0
          %632 = vmatprep.subr.mxu0 0.0
          %633 = vmatpush1.msra.mxu0 0.0
          %634 = vmatprep.subr.mxu0 0.0
          %635 = vmatpush1.msra.mxu0 0.0
          %636 = vmatprep.subr.mxu0 0.0
          %637 = vmatpush1.msra.mxu0 0.0
          %638 = vmatprep.subr.mxu0 0.0
          %639 = vmatpush1.msra.mxu0 0.0
          %640 = vmatprep.subr.mxu0 0.0
          %641 = vmatpush1.msra.mxu0 0.0
          %642 = vmatprep.subr.mxu0 0.0
          %643 = vmatpush1.msra.mxu0 0.0
          %644 = vmatprep.subr.mxu0 0.0
          %645 = vmatpush1.msra.mxu0 0.0
          %646 = vmatprep.subr.mxu0 0.0
          %647 = vmatpush1.msra.mxu0 0.0
          %648 = vmatprep.subr.mxu0 0.0
          %649 = vmatpush1.msra.mxu0 0.0
          %650 = vmatprep.subr.mxu0 0.0
          %651 = vmatpush1.msra.mxu0 0.0
          %652 = vmatprep.subr.mxu0 0.0
          %653 = vmatpush1.msra.mxu0 0.0
          %654 = vmatprep.subr.mxu0 0.0
          %655 = vmatpush1.msra.mxu0 0.0
          %656 = vmatprep.subr.mxu0 0.0
          %657 = vmatpush1.msra.mxu0 0.0
          %658 = vmatprep.subr.mxu0 0.0
          %659 = vmatpush1.msra.mxu0 0.0
          %660 = vmatprep.subr.mxu0 0.0
          %661 = vmatpush1.msra.mxu0 0.0
          %662 = vmatprep.subr.mxu0 0.0
          %663 = vmatpush1.msra.mxu0 %v530
          %664 = vmatprep.subr.mxu0 0.0
          %665 = vmatpush2.msra.mxu0 0.0
          %666 = vmatprep.subr.mxu0 0.0
          %667 = vmatpush2.msra.mxu0 0.0
          %668 = vmatprep.subr.mxu0 0.0
          %669 = vmatpush2.msra.mxu0 0.0
          %670 = vmatprep.subr.mxu0 0.0
          %671 = vmatpush2.msra.mxu0 0.0
          %672 = vmatprep.subr.mxu0 0.0
          %673 = vmatpush2.msra.mxu0 0.0
          %674 = vmatprep.subr.mxu0 0.0
          %675 = vmatpush2.msra.mxu0 0.0
          %676 = vmatprep.subr.mxu0 0.0
          %677 = vmatpush2.msra.mxu0 0.0
          %678 = vmatprep.subr.mxu0 0.0
          %679 = vmatpush2.msra.mxu0 0.0
          %680 = vmatprep.subr.mxu0 0.0
          %681 = vmatpush2.msra.mxu0 0.0
          %682 = vmatprep.subr.mxu0 0.0
          %683 = vmatpush2.msra.mxu0 0.0
          %684 = vmatprep.subr.mxu0 0.0
          %685 = vmatpush2.msra.mxu0 0.0
          %686 = vmatprep.subr.mxu0 0.0
          %687 = vmatpush2.msra.mxu0 0.0
          %688 = vmatprep.subr.mxu0 0.0
          %689 = vmatpush2.msra.mxu0 0.0
          %690 = vmatprep.subr.mxu0 0.0
          %691 = vmatpush2.msra.mxu0 0.0
          %692 = vmatprep.subr.mxu0 0.0
          %693 = vmatpush2.msra.mxu0 0.0
          %694 = vmatprep.subr.mxu0 0.0
          %695 = vmatpush2.msra.mxu0 0.0
          %696 = vmatprep.mubr.f32.mxu0 0.0
          %697 = vmatmul.mubr.f32.gmra.mxu0 %v630
          %v698 = vpop.f32.mrf.mxu0
          %v699 = vadd.f32 0.0, %v698
          %v700 = vpop.f32.mrf.mxu0
          %701 = vdwg.mxu0
          %v702 = vld [vmem:[#allocation5] sm:$0xff]
          %704 = vset.pattern.permute.xlu0 0
          %705 = vperm.xlu0 %704, %v612
          %v706 = vpop.permute.xlu0 %705
          %v708 = vmul.f32 %v706, %v702
          %v709 = vadd.f32 %v708, %v699
          %710 = vst [vmem:[#allocation5] sm:$0xff] %v709
          %711 = vst.msk [vmem:[#allocation3] sm:$0xff] %vm627, %v609
        $region44: #{single_head_self_attention.1} parent=35 // pred_fallthru
          _
        %p712 = scmp.eq.s32.totalorder %s25, %s24
        // Predicated region
        $region45: #{single_head_self_attention.1} parent=35 // pred_check
          %p713 = pneg %p712
        $region46: #{single_head_self_attention.1} parent=35 // pred_check_branch
          %715 = sbr.rel (%p713) target = $region48
        $region47: #{single_head_self_attention.1} parent=35 // pred_region
          %v716 = vld [vmem:[%s264] sm:$0xff]
          %v717 = vld [vmem:[%s2 + $0x8] sm:$0xff]
          %v718 = vld [vmem:[%s2 + $0x20] sm:$0xff]
          %v719 = vld [vmem:[%s2 + $0x38] sm:$0xff]
          %v720 = vld [vmem:[%s2 + $0x50] sm:$0xff]
          %v721 = vld [vmem:[%s3 + $0x1] sm:$0x1]
          %v723 = vlaneseq
          %v724 = vshrl.u32 %v723, 7
          %v725 = vsub.s32 0, %v724
          %v726 = vrot.slane %v721, %v725
          %vm728 = vcmask 261120
          %v730 = vsel %vm728, %v716, 0
          %732 = vmatprep.subr.mxu0 0.0
          %733 = vmatpush1.msra.mxu0 0.0
          %734 = vmatprep.subr.mxu0 0.0
          %735 = vmatpush1.msra.mxu0 0.0
          %736 = vmatprep.subr.mxu0 0.0
          %737 = vmatpush1.msra.mxu0 0.0
          %738 = vmatprep.subr.mxu0 0.0
          %739 = vmatpush1.msra.mxu0 0.0
          %740 = vmatprep.subr.mxu0 0.0
          %741 = vmatpush1.msra.mxu0 0.0
          %742 = vmatprep.subr.mxu0 0.0
          %743 = vmatpush1.msra.mxu0 0.0
          %744 = vmatprep.subr.mxu0 0.0
          %745 = vmatpush1.msra.mxu0 0.0
          %746 = vmatprep.subr.mxu0 0.0
          %747 = vmatpush1.msra.mxu0 0.0
          %748 = vmatprep.subr.mxu0 0.0
          %749 = vmatpush1.msra.mxu0 0.0
          %750 = vmatprep.subr.mxu0 0.0
          %751 = vmatpush1.msra.mxu0 0.0
          %752 = vmatprep.subr.mxu0 0.0
          %753 = vmatpush1.msra.mxu0 0.0
          %754 = vmatprep.subr.mxu0 0.0
          %755 = vmatpush1.msra.mxu0 0.0
          %756 = vmatprep.subr.mxu0 0.0
          %757 = vmatpush1.msra.mxu0 %v720
          %758 = vmatprep.subr.mxu0 0.0
          %759 = vmatpush1.msra.mxu0 %v719
          %760 = vmatprep.subr.mxu0 0.0
          %761 = vmatpush1.msra.mxu0 %v718
          %762 = vmatprep.subr.mxu0 0.0
          %763 = vmatpush1.msra.mxu0 %v717
          %764 = vmatprep.subr.mxu0 0.0
          %765 = vmatpush2.msra.mxu0 0.0
          %766 = vmatprep.subr.mxu0 0.0
          %767 = vmatpush2.msra.mxu0 0.0
          %768 = vmatprep.subr.mxu0 0.0
          %769 = vmatpush2.msra.mxu0 0.0
          %770 = vmatprep.subr.mxu0 0.0
          %771 = vmatpush2.msra.mxu0 0.0
          %772 = vmatprep.subr.mxu0 0.0
          %773 = vmatpush2.msra.mxu0 0.0
          %774 = vmatprep.subr.mxu0 0.0
          %775 = vmatpush2.msra.mxu0 0.0
          %776 = vmatprep.subr.mxu0 0.0
          %777 = vmatpush2.msra.mxu0 0.0
          %778 = vmatprep.subr.mxu0 0.0
          %779 = vmatpush2.msra.mxu0 0.0
          %780 = vmatprep.subr.mxu0 0.0
          %781 = vmatpush2.msra.mxu0 0.0
          %782 = vmatprep.subr.mxu0 0.0
          %783 = vmatpush2.msra.mxu0 0.0
          %784 = vmatprep.subr.mxu0 0.0
          %785 = vmatpush2.msra.mxu0 0.0
          %786 = vmatprep.subr.mxu0 0.0
          %787 = vmatpush2.msra.mxu0 0.0
          %788 = vmatprep.subr.mxu0 0.0
          %789 = vmatpush2.msra.mxu0 0.0
          %790 = vmatprep.subr.mxu0 0.0
          %791 = vmatpush2.msra.mxu0 0.0
          %792 = vmatprep.subr.mxu0 0.0
          %793 = vmatpush2.msra.mxu0 0.0
          %794 = vmatprep.subr.mxu0 0.0
          %795 = vmatpush2.msra.mxu0 0.0
          %796 = vmatprep.mubr.f32.mxu0 0.0
          %797 = vmatmul.mubr.f32.gmra.mxu0 %v730
          %v798 = vpop.f32.mrf.mxu0
          %v799 = vadd.f32 %v726, %v798
          %v800 = vpop.f32.mrf.mxu0
          %801 = vdwg.mxu0
          %v802 = vld [vmem:[%s2 + $0x10] sm:$0xff]
          %v803 = vld [vmem:[%s2 + $0x28] sm:$0xff]
          %v804 = vld [vmem:[%s2 + $0x40] sm:$0xff]
          %v805 = vld [vmem:[%s2 + $0x58] sm:$0xff]
          %v806 = vld [vmem:[%s3 + $0x2] sm:$0x1]
          %v808 = vlaneseq
          %v809 = vshrl.u32 %v808, 7
          %v810 = vsub.s32 0, %v809
          %v811 = vrot.slane %v806, %v810
          %813 = vmatprep.subr.mxu0 0.0
          %814 = vmatpush1.msra.mxu0 0.0
          %815 = vmatprep.subr.mxu0 0.0
          %816 = vmatpush1.msra.mxu0 0.0
          %817 = vmatprep.subr.mxu0 0.0
          %818 = vmatpush1.msra.mxu0 0.0
          %819 = vmatprep.subr.mxu0 0.0
          %820 = vmatpush1.msra.mxu0 0.0
          %821 = vmatprep.subr.mxu0 0.0
          %822 = vmatpush1.msra.mxu0 0.0
          %823 = vmatprep.subr.mxu0 0.0
          %824 = vmatpush1.msra.mxu0 0.0
          %825 = vmatprep.subr.mxu0 0.0
          %826 = vmatpush1.msra.mxu0 0.0
          %827 = vmatprep.subr.mxu0 0.0
          %828 = vmatpush1.msra.mxu0 0.0
          %829 = vmatprep.subr.mxu0 0.0
          %830 = vmatpush1.msra.mxu0 0.0
          %831 = vmatprep.subr.mxu0 0.0
          %832 = vmatpush1.msra.mxu0 0.0
          %833 = vmatprep.subr.mxu0 0.0
          %834 = vmatpush1.msra.mxu0 0.0
          %835 = vmatprep.subr.mxu0 0.0
          %836 = vmatpush1.msra.mxu0 0.0
          %837 = vmatprep.subr.mxu0 0.0
          %838 = vmatpush1.msra.mxu0 %v805
          %839 = vmatprep.subr.mxu0 0.0
          %840 = vmatpush1.msra.mxu0 %v804
          %841 = vmatprep.subr.mxu0 0.0
          %842 = vmatpush1.msra.mxu0 %v803
          %843 = vmatprep.subr.mxu0 0.0
          %844 = vmatpush1.msra.mxu0 %v802
          %845 = vmatprep.subr.mxu0 0.0
          %846 = vmatpush2.msra.mxu0 0.0
          %847 = vmatprep.subr.mxu0 0.0
          %848 = vmatpush2.msra.mxu0 0.0
          %849 = vmatprep.subr.mxu0 0.0
          %850 = vmatpush2.msra.mxu0 0.0
          %851 = vmatprep.subr.mxu0 0.0
          %852 = vmatpush2.msra.mxu0 0.0
          %853 = vmatprep.subr.mxu0 0.0
          %854 = vmatpush2.msra.mxu0 0.0
          %855 = vmatprep.subr.mxu0 0.0
          %856 = vmatpush2.msra.mxu0 0.0
          %857 = vmatprep.subr.mxu0 0.0
          %858 = vmatpush2.msra.mxu0 0.0
          %859 = vmatprep.subr.mxu0 0.0
          %860 = vmatpush2.msra.mxu0 0.0
          %861 = vmatprep.subr.mxu0 0.0
          %862 = vmatpush2.msra.mxu0 0.0
          %863 = vmatprep.subr.mxu0 0.0
          %864 = vmatpush2.msra.mxu0 0.0
          %865 = vmatprep.subr.mxu0 0.0
          %866 = vmatpush2.msra.mxu0 0.0
          %867 = vmatprep.subr.mxu0 0.0
          %868 = vmatpush2.msra.mxu0 0.0
          %869 = vmatprep.subr.mxu0 0.0
          %870 = vmatpush2.msra.mxu0 0.0
          %871 = vmatprep.subr.mxu0 0.0
          %872 = vmatpush2.msra.mxu0 0.0
          %873 = vmatprep.subr.mxu0 0.0
          %874 = vmatpush2.msra.mxu0 0.0
          %875 = vmatprep.subr.mxu0 0.0
          %876 = vmatpush2.msra.mxu0 0.0
          %877 = vmatprep.mubr.f32.mxu0 0.0
          %878 = vmatmul.mubr.f32.gmra.mxu0 %v730
          %v879 = vpop.f32.mrf.mxu0
          %v880 = vadd.f32 %v811, %v879
          %v881 = vpop.f32.mrf.mxu0
          %882 = vdwg.mxu0
          %v883 = vld [vmem:[#allocation2] sm:$0xff]
          %884 = vmatprep.subr.mxu0 0.0
          %885 = vmatpush1.xpose.msra.mxu0 0.0
          %886 = vmatprep.subr.mxu0 0.0
          %887 = vmatpush1.xpose.msra.mxu0 0.0
          %888 = vmatprep.subr.mxu0 0.0
          %889 = vmatpush1.xpose.msra.mxu0 0.0
          %890 = vmatprep.subr.mxu0 0.0
          %891 = vmatpush1.xpose.msra.mxu0 0.0
          %892 = vmatprep.subr.mxu0 0.0
          %893 = vmatpush1.xpose.msra.mxu0 0.0
          %894 = vmatprep.subr.mxu0 0.0
          %895 = vmatpush1.xpose.msra.mxu0 0.0
          %896 = vmatprep.subr.mxu0 0.0
          %897 = vmatpush1.xpose.msra.mxu0 0.0
          %898 = vmatprep.subr.mxu0 0.0
          %899 = vmatpush1.xpose.msra.mxu0 0.0
          %900 = vmatprep.subr.mxu0 0.0
          %901 = vmatpush1.xpose.msra.mxu0 0.0
          %902 = vmatprep.subr.mxu0 0.0
          %903 = vmatpush1.xpose.msra.mxu0 0.0
          %904 = vmatprep.subr.mxu0 0.0
          %905 = vmatpush1.xpose.msra.mxu0 0.0
          %906 = vmatprep.subr.mxu0 0.0
          %907 = vmatpush1.xpose.msra.mxu0 0.0
          %908 = vmatprep.subr.mxu0 0.0
          %909 = vmatpush1.xpose.msra.mxu0 0.0
          %910 = vmatprep.subr.mxu0 0.0
          %911 = vmatpush1.xpose.msra.mxu0 0.0
          %912 = vmatprep.subr.mxu0 0.0
          %913 = vmatpush1.xpose.msra.mxu0 0.0
          %914 = vmatprep.subr.mxu0 0.0
          %915 = vmatpush1.xpose.msra.mxu0 %v799
          %916 = vmatprep.subr.mxu0 0.0
          %917 = vmatpush2.xpose.msra.mxu0 0.0
          %918 = vmatprep.subr.mxu0 0.0
          %919 = vmatpush2.xpose.msra.mxu0 0.0
          %920 = vmatprep.subr.mxu0 0.0
          %921 = vmatpush2.xpose.msra.mxu0 0.0
          %922 = vmatprep.subr.mxu0 0.0
          %923 = vmatpush2.xpose.msra.mxu0 0.0
          %924 = vmatprep.subr.mxu0 0.0
          %925 = vmatpush2.xpose.msra.mxu0 0.0
          %926 = vmatprep.subr.mxu0 0.0
          %927 = vmatpush2.xpose.msra.mxu0 0.0
          %928 = vmatprep.subr.mxu0 0.0
          %929 = vmatpush2.xpose.msra.mxu0 0.0
          %930 = vmatprep.subr.mxu0 0.0
          %931 = vmatpush2.xpose.msra.mxu0 0.0
          %932 = vmatprep.subr.mxu0 0.0
          %933 = vmatpush2.xpose.msra.mxu0 0.0
          %934 = vmatprep.subr.mxu0 0.0
          %935 = vmatpush2.xpose.msra.mxu0 0.0
          %936 = vmatprep.subr.mxu0 0.0
          %937 = vmatpush2.xpose.msra.mxu0 0.0
          %938 = vmatprep.subr.mxu0 0.0
          %939 = vmatpush2.xpose.msra.mxu0 0.0
          %940 = vmatprep.subr.mxu0 0.0
          %941 = vmatpush2.xpose.msra.mxu0 0.0
          %942 = vmatprep.subr.mxu0 0.0
          %943 = vmatpush2.xpose.msra.mxu0 0.0
          %944 = vmatprep.subr.mxu0 0.0
          %945 = vmatpush2.xpose.msra.mxu0 0.0
          %946 = vmatprep.subr.mxu0 0.0
          %947 = vmatpush2.xpose.msra.mxu0 0.0
          %948 = vmatprep.mubr.f32.mxu0 0.0
          %949 = vmatmul.mubr.f32.gmra.mxu0 %v883
          %v950 = vpop.f32.mrf.mxu0
          %v951 = vadd.f32 0.0, %v950
          %v952 = vpop.f32.mrf.mxu0
          %953 = vdwg.mxu0
          %v954 = vlaneseq
          %v955 = vshrl.u32 %v954, 7
          %v956 = vlaneseq
          %v957 = vand.u32 %v956, 127
          %vm958 = vcmp.le.s32.totalorder %v957, %v955
          %v959 = vsel %vm958, %v951, -inf
          %v960 = vld [vmem:[#allocation3] sm:$0xff]
          %vm961 = vcmask 64512
          %v962 = vsel %vm961, %v959, -inf
          %963 = vmax.xlane.f32.xlu0 %v962
          %v964 = vpop.xlane.xlu0 %963
          %v965 = vmax.f32 %v960, %v964
          %v966 = vsub.f32 %v960, %v965
          %v967 = vmul.f32 %v966, 1.442695
          %v968 = vpow.pop %v967
          %970 = vset.pattern.permute.xlu0 0
          %971 = vperm.xlu0 %970, %v965
          %v972 = vpop.permute.xlu0 %971
          %v974 = vsub.f32 %v959, %v972
          %v975 = vmul.f32 %v974, 1.442695
          %v976 = vpow.pop %v975
          %v977 = vld [vmem:[#allocation4] sm:$0xff]
          %v978 = vmul.f32 %v968, %v977
          %v979 = vsel %vm961, %v976, 0.0
          %980 = vadd.xlane.f32.xlu0 %v979
          %v981 = vpop.xlane.xlu0 %980
          %v982 = vadd.f32 %v978, %v981
          %vm983 = vcmask 7168
          %984 = vst.msk [vmem:[#allocation4] sm:$0xff] %vm983, %v982
          %v986 = vsel %vm961, %v976, 0
          %988 = vmatprep.subr.mxu0 0.0
          %989 = vmatpush1.msra.mxu0 0.0
          %990 = vmatprep.subr.mxu0 0.0
          %991 = vmatpush1.msra.mxu0 0.0
          %992 = vmatprep.subr.mxu0 0.0
          %993 = vmatpush1.msra.mxu0 0.0
          %994 = vmatprep.subr.mxu0 0.0
          %995 = vmatpush1.msra.mxu0 0.0
          %996 = vmatprep.subr.mxu0 0.0
          %997 = vmatpush1.msra.mxu0 0.0
          %998 = vmatprep.subr.mxu0 0.0
          %999 = vmatpush1.msra.mxu0 0.0
          %1000 = vmatprep.subr.mxu0 0.0
          %1001 = vmatpush1.msra.mxu0 0.0
          %1002 = vmatprep.subr.mxu0 0.0
          %1003 = vmatpush1.msra.mxu0 0.0
          %1004 = vmatprep.subr.mxu0 0.0
          %1005 = vmatpush1.msra.mxu0 0.0
          %1006 = vmatprep.subr.mxu0 0.0
          %1007 = vmatpush1.msra.mxu0 0.0
          %1008 = vmatprep.subr.mxu0 0.0
          %1009 = vmatpush1.msra.mxu0 0.0
          %1010 = vmatprep.subr.mxu0 0.0
          %1011 = vmatpush1.msra.mxu0 0.0
          %1012 = vmatprep.subr.mxu0 0.0
          %1013 = vmatpush1.msra.mxu0 0.0
          %1014 = vmatprep.subr.mxu0 0.0
          %1015 = vmatpush1.msra.mxu0 0.0
          %1016 = vmatprep.subr.mxu0 0.0
          %1017 = vmatpush1.msra.mxu0 0.0
          %1018 = vmatprep.subr.mxu0 0.0
          %1019 = vmatpush1.msra.mxu0 %v880
          %1020 = vmatprep.subr.mxu0 0.0
          %1021 = vmatpush2.msra.mxu0 0.0
          %1022 = vmatprep.subr.mxu0 0.0
          %1023 = vmatpush2.msra.mxu0 0.0
          %1024 = vmatprep.subr.mxu0 0.0
          %1025 = vmatpush2.msra.mxu0 0.0
          %1026 = vmatprep.subr.mxu0 0.0
          %1027 = vmatpush2.msra.mxu0 0.0
          %1028 = vmatprep.subr.mxu0 0.0
          %1029 = vmatpush2.msra.mxu0 0.0
          %1030 = vmatprep.subr.mxu0 0.0
          %1031 = vmatpush2.msra.mxu0 0.0
          %1032 = vmatprep.subr.mxu0 0.0
          %1033 = vmatpush2.msra.mxu0 0.0
          %1034 = vmatprep.subr.mxu0 0.0
          %1035 = vmatpush2.msra.mxu0 0.0
          %1036 = vmatprep.subr.mxu0 0.0
          %1037 = vmatpush2.msra.mxu0 0.0
          %1038 = vmatprep.subr.mxu0 0.0
          %1039 = vmatpush2.msra.mxu0 0.0
          %1040 = vmatprep.subr.mxu0 0.0
          %1041 = vmatpush2.msra.mxu0 0.0
          %1042 = vmatprep.subr.mxu0 0.0
          %1043 = vmatpush2.msra.mxu0 0.0
          %1044 = vmatprep.subr.mxu0 0.0
          %1045 = vmatpush2.msra.mxu0 0.0
          %1046 = vmatprep.subr.mxu0 0.0
          %1047 = vmatpush2.msra.mxu0 0.0
          %1048 = vmatprep.subr.mxu0 0.0
          %1049 = vmatpush2.msra.mxu0 0.0
          %1050 = vmatprep.subr.mxu0 0.0
          %1051 = vmatpush2.msra.mxu0 0.0
          %1052 = vmatprep.mubr.f32.mxu0 0.0
          %1053 = vmatmul.mubr.f32.gmra.mxu0 %v986
          %v1054 = vpop.f32.mrf.mxu0
          %v1055 = vadd.f32 0.0, %v1054
          %v1056 = vpop.f32.mrf.mxu0
          %1057 = vdwg.mxu0
          %v1058 = vld [vmem:[#allocation5] sm:$0xff]
          %1060 = vset.pattern.permute.xlu0 0
          %1061 = vperm.xlu0 %1060, %v968
          %v1062 = vpop.permute.xlu0 %1061
          %v1064 = vmul.f32 %v1062, %v1058
          %v1065 = vadd.f32 %v1064, %v1055
          %1066 = vst [vmem:[#allocation5] sm:$0xff] %v1065
          %1067 = vst.msk [vmem:[#allocation3] sm:$0xff] %vm983, %v965
          %v1068 = vld [vmem:[#allocation4] sm:$0xff]
          %v1069 = vld [vmem:[#allocation5] sm:$0xff]
          %1071 = vset.pattern.permute.xlu0 0
          %1072 = vperm.xlu0 %1071, %v1068
          %v1073 = vpop.permute.xlu0 %1072
          %v1075 = vrcp.pop %v1073
          %v1076 = vmul.f32 %v1069, %v1075
          %1077 = vst [vmem:[%s248] sm:$0xff] %v1076
        $region48: #{single_head_self_attention.1} parent=35 // pred_fallthru
          _
        %s1078 = sand.u32 %s149, 1
        %s1079 = scalar_lea.sflag [#allocation7], %s1078
        %s1080 = sand.u32 %s149, 1
        %s1081 = smul.addr %s1080, 8
        %s1082 = scalar_lea.vmem [#allocation6], %s1081
        // Predicated region
        $region49: #{single_head_self_attention.1} parent=35 // pred_check
          %p1083 = pneg %p159
        $region50: #{single_head_self_attention.1} parent=35 // pred_check_branch
          %1085 = sbr.rel (%p1083) target = $region52
        $region51: #{single_head_self_attention.1} parent=35 // pred_region
          %s1087 = ssub.s32 128, 128
          %1088 = vsyncadd %s1079, %s1087
          %s1089 = sadd.s32 %s24, %s23
          %s1090 = smul.addr %s1089, 128
          %s1091 = scalar_lea.hbm %s4, %s1090
          %s1093 = sshll.u32 %s1082, 4
          %s1094 = int_to_ptr.vmem [resolvable:$true] %s1093
          %1096 = dma.vmem_to_hbm [thread:$0]  %s1094, 128, %s1091, %s1079
        $region52: #{single_head_self_attention.1} parent=35 // pred_fallthru
          _
      $region36: #{single_head_self_attention.1} parent=5 // pred_fallthru
        _
      %p1097 = scmp.le.s32.totalorder 2, %s13
      // Predicated region
      $region53: #{single_head_self_attention.1} parent=5 // pred_check
        %p1098 = pneg %p1097
      $region54: #{single_head_self_attention.1} parent=5 // pred_check_branch
        %1100 = sbr.rel (%p1098) target = $region56
      $region55: #{single_head_self_attention.1} parent=5 // pred_region
        %s1101 = ssub.s32 %s13, 2
        // Predicated region
        $region57: #{single_head_self_attention.1} parent=55 // pred_check
          %p1102 = pneg %p165
        $region58: #{single_head_self_attention.1} parent=55 // pred_check_branch
          %1104 = sbr.rel (%p1102) target = $region60
        $region59: #{single_head_self_attention.1} parent=55 // pred_region
          %s1105 = sand.u32 %s150, 1
          %s1106 = scalar_lea.sflag [#allocation7], %s1105
          %s1107 = sand.u32 %s150, 1
          %s1108 = smul.addr %s1107, 8
          %s1109 = scalar_lea.vmem [#allocation6], %s1108
          %1110 = dma.done %s1106, 128
        $region60: #{single_head_self_attention.1} parent=55 // pred_fallthru
          _
      $region56: #{single_head_self_attention.1} parent=5 // pred_fallthru
        _
    $region6: #{single_head_self_attention.1} parent=1 // loop_footer
      %s17 = sadd.s32 1, %s13
    $region7: #{single_head_self_attention.1} parent=1 // loop_footer_branch
      %12 = sbr.rel target = $region3
    $region8: #{single_head_self_attention.1} parent=1 // loop_exit
      _
    %1111 = vsyncpa [#allocation7], 1
    %s1112 = scalar_lea.sflag [#allocation7], 1
    %1113 = vsyncpa %s1112, 1

</llo_original>
